<compile_context>
chip_gen: v5e
topology: v5e:2x2
jax: 0.10.0
libtpu: 0.0.40
codegen_flags: <defaults>
</compile_context>

<pallas_src>
import functools

import jax
import jax.numpy as jnp
from jax.experimental import pallas as pl
from jax.experimental.pallas import tpu as pltpu

C_IN = 201           # input channels (fixed by nn.Linear(201, 16))
C_IN_PAD = 256       # zero-padded K / lane dimension (keeps the embedding dot aligned)
C_HID = 16
N_HEADS = 4
HEAD_DIM = C_HID // N_HEADS
C_OUT = 2
OUT_PAD = 8          # output slab width (block last dim == full array dim -> legal)
BN_EPS = 1e-5

TAPS_INC = (-2, -1, 0, 1, 2)     # conv1 + conv3(pad=1) + conv5(pad=2) offsets
TAPS_DIL = (-4, -2, 0)           # causal dilated conv (k=3, dilation=2)

# ---- packed weight array row layout (width PACK_W = 256) -------------------
R_EMB = 0                        # (16, 256)  embedding (natural (out,in), K-padded)
R_WC = R_EMB + C_HID             # 16   (80, 32) stacked inception taps (branches fused)
R_WN = R_WC + 5 * C_HID          # 96   (32, 32) weight-normed 1x1 (block-diag)
R_WD = R_WN + 2 * C_HID          # 128  (96, 32) stacked dilated taps (block-diag)
R_QKV = R_WD + 3 * 2 * C_HID     # 224  (16, 48) fused QKV projection
R_WO = R_QKV + C_HID             # 240  (16, 16) attention out projection (transposed)
R_FC = R_WO + C_HID              # 256  (16, 8)  final Linear (transposed, lane-padded)
PACK_ROWS = R_FC + C_HID         # 272
PACK_W = 256

# ---- packed bias/scale array rows (width 128) -------------------------------
V_BEMB, V_BC, V_WNB, V_S, V_T, V_BD, V_BQKV, V_BO, V_BFC = range(9)
VPACK_ROWS = 16


# -----------------------------------------------------------------------------
# Pallas kernel
# -----------------------------------------------------------------------------
def _ticn_kernel(x_ref, w_ref, v_ref, o_ref, *, seq_len):
    f32 = jnp.float32
    L = seq_len
    M = x_ref.shape[0]                  # B_TILE * L rows in this block
    B = M // L

    # Position of every row inside its own length-L sample. Boundary-validity
    # masks are hoisted: one iota/compare chain per distinct offset.
    pos = jax.lax.broadcasted_iota(jnp.int32, (M, 1), 0) % L
    valid = {off: jnp.logical_and(pos + off >= 0, pos + off < L)
             for off in sorted(set(TAPS_INC + TAPS_DIL)) if off != 0}

    def shift_rows(a, off):
        # y[m] = a[m + off] when row m+off stays inside the same sample, else 0.
        if off == 0:
            return a
        rolled = pltpu.roll(a, (-off) % M, axis=0)
        return jnp.where(valid[off], rolled, 0.0)

    # ---- embedding: Linear(201 -> 16)  (bf16 input, K zero-padded to 256) ---
    x = x_ref[...]                                                    # (M, 256) bf16
    wemb = w_ref[R_EMB:R_EMB + C_HID, :].astype(x.dtype)              # (16, 256)
    e = jax.lax.dot_general(x, wemb, (((1,), (1,)), ((), ())),
                            preferred_element_type=f32)
    e = e + v_ref[V_BEMB:V_BEMB + 1, 0:C_HID]                         # (M, 16)

    # ---- Inception conv1+conv3+conv5, both branches fused: ONE matmul -------
    # (M, 80) shifted slab x (80, 32) stacked tap weights
    slab = jnp.concatenate([shift_rows(e, off) for off in TAPS_INC], axis=1)
    acc = jnp.dot(slab, w_ref[R_WC:R_WC + 5 * C_HID, 0:2 * C_HID],
                  preferred_element_type=f32)
    acc = acc + v_ref[V_BC:V_BC + 1, 0:2 * C_HID]                     # (M, 32)

    # ---- weight-normed 1x1 conv (block-diagonal over branches) + ReLU -------
    acc = jnp.dot(acc, w_ref[R_WN:R_WN + 2 * C_HID, 0:2 * C_HID],
                  preferred_element_type=f32)
    acc = jnp.maximum(acc + v_ref[V_WNB:V_WNB + 1, 0:2 * C_HID], 0.0)
    # BatchNorm1d (eval, running stats) folded to scale/shift; Dropout == id.
    acc = acc * v_ref[V_S:V_S + 1, 0:2 * C_HID] + v_ref[V_T:V_T + 1, 0:2 * C_HID]

    # ---- causal dilated conv (k=3, dilation=2): ONE (M,96)x(96,32) matmul ---
    dslab = jnp.concatenate([shift_rows(acc, off) for off in TAPS_DIL], axis=1)
    out = jnp.dot(dslab, w_ref[R_WD:R_WD + 3 * 2 * C_HID, 0:2 * C_HID],
                  preferred_element_type=f32)
    out = out + v_ref[V_BD:V_BD + 1, 0:2 * C_HID]
    h = out[:, 0:C_HID] + out[:, C_HID:2 * C_HID]                     # (M, 16)

    # ---- multi-head self-attention: heads folded into the dot batch dim -----
    qkv = jnp.dot(h, w_ref[R_QKV:R_QKV + C_HID, 0:3 * C_HID],
                  preferred_element_type=f32)
    qkv = qkv + v_ref[V_BQKV:V_BQKV + 1, 0:3 * C_HID]                 # (M, 48)
    qkv3 = qkv.reshape(B, L, 3 * C_HID)
    scale = 1.0 / (HEAD_DIM ** 0.5)

    def heads_to_batch(col0):
        # (B, L, 16) head-major columns -> (N_HEADS*B, L, HEAD_DIM), head outer
        return jnp.concatenate(
            [qkv3[:, :, col0 + hd * HEAD_DIM:col0 + (hd + 1) * HEAD_DIM]
             for hd in range(N_HEADS)], axis=0)

    qh = heads_to_batch(0) * scale                                    # (H*B, L, 4)
    kh = heads_to_batch(C_HID)
    vh = heads_to_batch(2 * C_HID)

    sc = jax.lax.dot_general(qh, kh, (((2,), (2,)), ((0,), (0,))),
                             preferred_element_type=f32)              # (H*B, L, L)
    sc = sc - jnp.max(sc, axis=-1, keepdims=True)
    p = jnp.exp(sc)
    p = p * pl.reciprocal(jnp.sum(p, axis=-1, keepdims=True), approx=True)
    oh = jax.lax.dot_general(p, vh, (((2,), (1,)), ((0,), (0,))),
                             preferred_element_type=f32)              # (H*B, L, 4)

    # reassemble heads along lanes (head-major order) -> (M, 16); one out proj
    heads = jnp.concatenate([oh[hd * B:(hd + 1) * B] for hd in range(N_HEADS)],
                            axis=-1).reshape(M, C_HID)
    attn = jnp.dot(heads, w_ref[R_WO:R_WO + C_HID, 0:C_HID],
                   preferred_element_type=f32)
    attn = attn + v_ref[V_BO:V_BO + 1, 0:C_HID]

    # ---- final Linear(16 -> 2), written as a narrow (M, 8) slab -------------
    y = jnp.dot(attn, w_ref[R_FC:R_FC + C_HID, 0:OUT_PAD],
                preferred_element_type=f32)
    o_ref[...] = y + v_ref[V_BFC:V_BFC + 1, 0:OUT_PAD]


# -----------------------------------------------------------------------------
# Wrapper / glue
# -----------------------------------------------------------------------------
def ticn_forward(x, wpack, vpack, *, b_tile=None):
    """x: (B, 201, L) float32 -> (B, L, 2) float32.

    b_tile samples are processed per grid step (M = b_tile*L rows). Default is
    ~ceil(B/2) capped at 32: guarantees >= 2 'parallel' grid steps (both v7x
    TensorCores busy) and M >= 256 rows on v6e once B is large.
    """
    B, C, L = x.shape
    assert C == C_IN, C
    if b_tile is None:
        b_tile = max(1, min(32, (B + 1) // 2))
    while (b_tile * L) % 16 != 0:        # bf16 sublane tiling of the input block
        b_tile += 1
    m_tile = b_tile * L
    b_pad = ((B + b_tile - 1) // b_tile) * b_tile

    # bf16 activations: MXU multiplies in bf16 by default, so no accuracy cost;
    # halves input HBM traffic (and the materialized padded copy below).
    xt = jnp.transpose(x, (0, 2, 1)).astype(jnp.bfloat16)            # (B, L, 201)
    xt = jnp.pad(xt, ((0, b_pad - B), (0, 0), (0, C_IN_PAD - C)))
    xflat = xt.reshape(b_pad * L, C_IN_PAD)                          # (b_pad*L, 256)

    out = pl.pallas_call(
        functools.partial(_ticn_kernel, seq_len=L),
        out_shape=jax.ShapeDtypeStruct((b_pad * L, OUT_PAD), jnp.float32),
        grid=(b_pad // b_tile,),
        in_specs=[
            pl.BlockSpec((m_tile, C_IN_PAD), lambda i: (i, 0)),
            pl.BlockSpec((PACK_ROWS, PACK_W), lambda i: (0, 0)),
            pl.BlockSpec((VPACK_ROWS, 128), lambda i: (0, 0)),
        ],
        out_specs=pl.BlockSpec((m_tile, OUT_PAD), lambda i: (i, 0)),
        compiler_params=pltpu.CompilerParams(
            dimension_semantics=("parallel",)),
    )(xflat, wpack, vpack)

    return out.reshape(b_pad, L, OUT_PAD)[:B, :, :C_OUT]


# -----------------------------------------------------------------------------
# Parameter construction / folding
# -----------------------------------------------------------------------------
def init_raw_params(key):
    keys = iter(jax.random.split(key, 64))

    def nrm(shape, s=0.1):
        return s * jax.random.normal(next(keys), shape, dtype=jnp.float32)

    raw = {"emb_w": nrm((C_HID, C_IN)), "emb_b": nrm((C_HID,))}
    for i in (1, 2):
        raw[f"inc{i}_w1"] = nrm((C_HID, C_HID, 1)); raw[f"inc{i}_b1"] = nrm((C_HID,))
        raw[f"inc{i}_w3"] = nrm((C_HID, C_HID, 3)); raw[f"inc{i}_b3"] = nrm((C_HID,))
        raw[f"inc{i}_w5"] = nrm((C_HID, C_HID, 5)); raw[f"inc{i}_b5"] = nrm((C_HID,))
        raw[f"norm{i}_v"] = nrm((C_HID, C_HID, 1))
        raw[f"norm{i}_g"] = 1.0 + 0.1 * jax.random.uniform(
            next(keys), (C_HID, 1, 1), dtype=jnp.float32)
        raw[f"norm{i}_b"] = nrm((C_HID,))
        raw[f"bn{i}_gamma"] = jnp.ones((C_HID,), jnp.float32)
        raw[f"bn{i}_beta"] = jnp.zeros((C_HID,), jnp.float32)
        raw[f"bn{i}_mean"] = jnp.zeros((C_HID,), jnp.float32)
        raw[f"bn{i}_var"] = jnp.ones((C_HID,), jnp.float32)
        raw[f"dil{i}_w"] = nrm((C_HID, C_HID, 3)); raw[f"dil{i}_b"] = nrm((C_HID,))
    raw["attn_in_w"] = nrm((3 * C_HID, C_HID)); raw["attn_in_b"] = nrm((3 * C_HID,))
    raw["attn_out_w"] = nrm((C_HID, C_HID)); raw["attn_out_b"] = nrm((C_HID,))
    raw["fc_w"] = nrm((C_OUT, C_HID)); raw["fc_b"] = nrm((C_OUT,))
    return raw


def weight_norm_weight(v, g):
    # PyTorch weight_norm (dim=0): w = g * v / ||v||, norm over all dims but 0
    norm = jnp.sqrt(jnp.sum(v * v, axis=(1, 2), keepdims=True))
    return g * v / norm


def prepare_packed_params(raw):
    """Fold torch-shaped weights into the two packed kernel arrays."""
    f32 = jnp.float32
    z16 = jnp.zeros((C_HID, C_HID), f32)

    def block_diag2(a, b):
        return jnp.concatenate(
            [jnp.concatenate([a, z16], axis=1),
             jnp.concatenate([z16, b], axis=1)], axis=0)             # (32, 32)

    # embedding (natural (out,in) layout, K padded 201 -> 256)
    wembT = jnp.pad(raw["emb_w"], ((0, 0), (0, C_IN_PAD - C_IN)))    # (16, 256)

    # inception: fold conv1/conv3/conv5 into per-offset taps, fuse both branches
    def inc_tap(i, j, off):
        w = raw[f"inc{i}_w5"][:, :, j]               # conv5 tap j -> offset j-2
        if 0 <= j - 1 <= 2:                          # conv3 tap j-1 -> offset j-2
            w = w + raw[f"inc{i}_w3"][:, :, j - 1]
        if off == 0:                                 # conv1 -> offset 0
            w = w + raw[f"inc{i}_w1"][:, :, 0]
        return w.T                                   # (in, out)

    wc = jnp.concatenate(
        [jnp.concatenate([inc_tap(1, j, off), inc_tap(2, j, off)], axis=1)
         for j, off in enumerate(TAPS_INC)], axis=0)                 # (80, 32)
    bc = jnp.concatenate(
        [raw["inc1_b1"] + raw["inc1_b3"] + raw["inc1_b5"],
         raw["inc2_b1"] + raw["inc2_b3"] + raw["inc2_b5"]])          # (32,)

    wn1 = weight_norm_weight(raw["norm1_v"], raw["norm1_g"])[:, :, 0].T
    wn2 = weight_norm_weight(raw["norm2_v"], raw["norm2_g"])[:, :, 0].T
    wn = block_diag2(wn1, wn2)                                       # (32, 32)
    wnb = jnp.concatenate([raw["norm1_b"], raw["norm2_b"]])

    s1 = raw["bn1_gamma"] / jnp.sqrt(raw["bn1_var"] + BN_EPS)
    s2 = raw["bn2_gamma"] / jnp.sqrt(raw["bn2_var"] + BN_EPS)
    s = jnp.concatenate([s1, s2])
    t = jnp.concatenate([raw["bn1_beta"] - raw["bn1_mean"] * s1,
                         raw["bn2_beta"] - raw["bn2_mean"] * s2])

    wd = jnp.concatenate(
        [block_diag2(raw["dil1_w"][:, :, j].T, raw["dil2_w"][:, :, j].T)
         for j in range(3)], axis=0)                                 # (96, 32)
    bd = jnp.concatenate([raw["dil1_b"], raw["dil2_b"]])

    wqkv = raw["attn_in_w"].T                                        # (16, 48)
    bqkv = raw["attn_in_b"]                                          # (48,)
    woT = raw["attn_out_w"].T                                        # (16, 16)
    bo = raw["attn_out_b"]                                           # (16,)
    wfcT = raw["fc_w"].T                                             # (16, 2)
    bfc = raw["fc_b"]                                                # (2,)

    def rowblock(w):
        return jnp.pad(w, ((0, 0), (0, PACK_W - w.shape[1]))).astype(f32)

    wpack = jnp.concatenate(
        [rowblock(wembT), rowblock(wc), rowblock(wn), rowblock(wd),
         rowblock(wqkv), rowblock(woT), rowblock(wfcT)], axis=0)     # (272, 256)
    assert wpack.shape == (PACK_ROWS, PACK_W), wpack.shape

    def vrow(v):
        return jnp.pad(v, (0, 128 - v.shape[0])).astype(f32)[None, :]

    vpack = jnp.concatenate(
        [vrow(raw["emb_b"]), vrow(bc), vrow(wnb), vrow(s), vrow(t), vrow(bd),
         vrow(bqkv), vrow(bo), vrow(bfc),
         jnp.zeros((VPACK_ROWS - 9, 128), f32)], axis=0)             # (16, 128)
    assert vpack.shape == (VPACK_ROWS, 128), vpack.shape
    return wpack, vpack


# -----------------------------------------------------------------------------
# Pure-JAX reference (independent formulation: lax.conv) for validation
# -----------------------------------------------------------------------------
def reference_forward(x, raw):
    B = x.shape[0]
    xt = jnp.transpose(x, (0, 2, 1))
    e = xt @ raw["emb_w"].T + raw["emb_b"]
    xc = jnp.transpose(e, (0, 2, 1))                                  # (B, 16, L)

    def conv1d(z, w, b, pad, dil=1):
        y = jax.lax.conv_general_dilated(
            z, w, window_strides=(1,), padding=[(pad, pad)],
            rhs_dilation=(dil,), dimension_numbers=("NCH", "OIH", "NCH"))
        return y + b[None, :, None]

    def branch(i):
        y = (conv1d(xc, raw[f"inc{i}_w1"], raw[f"inc{i}_b1"], 0)
             + conv1d(xc, raw[f"inc{i}_w3"], raw[f"inc{i}_b3"], 1)
             + conv1d(xc, raw[f"inc{i}_w5"], raw[f"inc{i}_b5"], 2))
        wn = weight_norm_weight(raw[f"norm{i}_v"], raw[f"norm{i}_g"])
        y = jnp.maximum(conv1d(y, wn, raw[f"norm{i}_b"], 0), 0.0)
        scale = raw[f"bn{i}_gamma"] / jnp.sqrt(raw[f"bn{i}_var"] + BN_EPS)
        shift = raw[f"bn{i}_beta"] - raw[f"bn{i}_mean"] * scale
        y = y * scale[None, :, None] + shift[None, :, None]
        return conv1d(y, raw[f"dil{i}_w"], raw[f"dil{i}_b"], 4, dil=2)[:, :, :-4]

    h = branch(1) + branch(2)
    hs = jnp.transpose(h, (0, 2, 1))                                  # (B, L, 16)
    wi, bi = raw["attn_in_w"], raw["attn_in_b"]
    q = hs @ wi[0:C_HID].T + bi[0:C_HID]
    k = hs @ wi[C_HID:2 * C_HID].T + bi[C_HID:2 * C_HID]
    v = hs @ wi[2 * C_HID:].T + bi[2 * C_HID:]
    L = hs.shape[1]
    qh = q.reshape(B, L, N_HEADS, HEAD_DIM) * (HEAD_DIM ** -0.5)
    kh = k.reshape(B, L, N_HEADS, HEAD_DIM)
    vh = v.reshape(B, L, N_HEADS, HEAD_DIM)
    sc = jnp.einsum("bqhd,bkhd->bhqk", qh, kh)
    p = jax.nn.softmax(sc, axis=-1)
    oh = jnp.einsum("bhqk,bkhd->bqhd", p, vh).reshape(B, L, C_HID)
    attn = oh @ raw["attn_out_w"].T + raw["attn_out_b"]
    return attn @ raw["fc_w"].T + raw["fc_b"]                          # (B, L, 2)


if __name__ == "__main__":
    key = jax.random.PRNGKey(0)
    kx, kp = jax.random.split(key)

    raw = init_raw_params(kp)
    wpack, vpack = prepare_packed_params(raw)

    # Two configs: B=2 (no batch padding, grid=2) and B=5 (exercises batch pad).
    for B, L in ((2, 16), (5, 16)):
        x = jax.random.normal(jax.random.fold_in(kx, B), (B, C_IN, L),
                              dtype=jnp.float32)
        out = jax.block_until_ready(ticn_forward(x, wpack, vpack))
        assert out.shape == (B, L, C_OUT), out.shape

        ref = reference_forward(x, raw)
        err = float(jnp.max(jnp.abs(out - ref)))
        # bf16 inputs + default (bf16-multiply / f32-accumulate) MXU precision
        # + approx reciprocal in softmax -> allow a few e-3 of divergence.
        if not jnp.allclose(out, ref, rtol=3e-2, atol=3e-2):
            raise AssertionError(
                f"Pallas kernel mismatch vs reference (B={B}): max abs err={err:e}")

    print("KERNEL_OK")
</pallas_src>

<mosaic_0001>
module attributes {stable_mosaic.version = 11 : i64} {
  func.func @_ticn_kernel(%arg0: i32, %arg1: memref<16x256xbf16, #tpu.memory_space<vmem>>, %arg2: memref<272x256xf32, #tpu.memory_space<vmem>>, %arg3: memref<16x128xf32, #tpu.memory_space<vmem>>, %arg4: memref<16x8xf32, #tpu.memory_space<vmem>>) attributes {dimension_semantics = [#tpu.dimension_semantics<parallel>], iteration_bounds = array<i64: 2>, scalar_prefetch = 0 : i64, scratch_operands = 0 : i64, tpu.core_type = #tpu.core_type<tc>, window_params = [{transform_indices = @transform_0, window_bounds = array<i64: 16, 256>}, {pipeline_mode = #tpu.pipeline_mode<synchronous>, transform_indices = @transform_1, window_bounds = array<i64: 272, 256>}, {pipeline_mode = #tpu.pipeline_mode<synchronous>, transform_indices = @transform_2, window_bounds = array<i64: 16, 128>}, {transform_indices = @transform_3, window_bounds = array<i64: 16, 8>}]} {
    %0 = tpu.iota {dimensions = array<i32: 0>} : vector<16x1xi32>
    %c16_i32 = arith.constant 16 : i32
    %c0_i32 = arith.constant 0 : i32
    %1 = arith.cmpi eq, %c16_i32, %c0_i32 : i32
    %c1_i32 = arith.constant 1 : i32
    %2 = arith.select %1, %c1_i32, %c16_i32 : i32
    %3 = vector.broadcast %2 : i32 to vector<16x1xi32>
    %4 = arith.remsi %0, %3 : vector<16x1xi32>
    %c0_i32_0 = arith.constant 0 : i32
    %5 = vector.broadcast %c0_i32_0 : i32 to vector<16x1xi32>
    %6 = arith.cmpi ne, %4, %5 : vector<16x1xi32>
    %c0_i32_1 = arith.constant 0 : i32
    %7 = vector.broadcast %c0_i32_1 : i32 to vector<16x1xi32>
    %8 = arith.cmpi slt, %4, %7 : vector<16x1xi32>
    %c0_i32_2 = arith.constant 0 : i32
    %9 = arith.cmpi slt, %2, %c0_i32_2 : i32
    %10 = vector.broadcast %9 : i1 to vector<16x1xi1>
    %11 = vector.broadcast %10 : vector<16x1xi1> to vector<16x1xi1>
    %12 = arith.xori %8, %11 : vector<16x1xi1>
    %13 = arith.andi %12, %6 : vector<16x1xi1>
    %14 = vector.broadcast %2 : i32 to vector<16x1xi32>
    %15 = arith.addi %4, %14 : vector<16x1xi32>
    %16 = arith.select %13, %15, %4 : vector<16x1xi1>, vector<16x1xi32>
    %c-4_i32 = arith.constant -4 : i32
    %17 = vector.broadcast %c-4_i32 : i32 to vector<16x1xi32>
    %18 = arith.addi %16, %17 : vector<16x1xi32>
    %c0_i32_3 = arith.constant 0 : i32
    %19 = vector.broadcast %c0_i32_3 : i32 to vector<16x1xi32>
    %20 = arith.cmpi sge, %18, %19 : vector<16x1xi32>
    %c-4_i32_4 = arith.constant -4 : i32
    %21 = vector.broadcast %c-4_i32_4 : i32 to vector<16x1xi32>
    %22 = arith.addi %16, %21 : vector<16x1xi32>
    %c16_i32_5 = arith.constant 16 : i32
    %23 = vector.broadcast %c16_i32_5 : i32 to vector<16x1xi32>
    %24 = arith.cmpi slt, %22, %23 : vector<16x1xi32>
    %25 = arith.andi %20, %24 : vector<16x1xi1>
    %c-2_i32 = arith.constant -2 : i32
    %26 = vector.broadcast %c-2_i32 : i32 to vector<16x1xi32>
    %27 = arith.addi %16, %26 : vector<16x1xi32>
    %c0_i32_6 = arith.constant 0 : i32
    %28 = vector.broadcast %c0_i32_6 : i32 to vector<16x1xi32>
    %29 = arith.cmpi sge, %27, %28 : vector<16x1xi32>
    %c-2_i32_7 = arith.constant -2 : i32
    %30 = vector.broadcast %c-2_i32_7 : i32 to vector<16x1xi32>
    %31 = arith.addi %16, %30 : vector<16x1xi32>
    %c16_i32_8 = arith.constant 16 : i32
    %32 = vector.broadcast %c16_i32_8 : i32 to vector<16x1xi32>
    %33 = arith.cmpi slt, %31, %32 : vector<16x1xi32>
    %34 = arith.andi %29, %33 : vector<16x1xi1>
    %c-1_i32 = arith.constant -1 : i32
    %35 = vector.broadcast %c-1_i32 : i32 to vector<16x1xi32>
    %36 = arith.addi %16, %35 : vector<16x1xi32>
    %c0_i32_9 = arith.constant 0 : i32
    %37 = vector.broadcast %c0_i32_9 : i32 to vector<16x1xi32>
    %38 = arith.cmpi sge, %36, %37 : vector<16x1xi32>
    %c-1_i32_10 = arith.constant -1 : i32
    %39 = vector.broadcast %c-1_i32_10 : i32 to vector<16x1xi32>
    %40 = arith.addi %16, %39 : vector<16x1xi32>
    %c16_i32_11 = arith.constant 16 : i32
    %41 = vector.broadcast %c16_i32_11 : i32 to vector<16x1xi32>
    %42 = arith.cmpi slt, %40, %41 : vector<16x1xi32>
    %43 = arith.andi %38, %42 : vector<16x1xi1>
    %c1_i32_12 = arith.constant 1 : i32
    %44 = vector.broadcast %c1_i32_12 : i32 to vector<16x1xi32>
    %45 = arith.addi %16, %44 : vector<16x1xi32>
    %c0_i32_13 = arith.constant 0 : i32
    %46 = vector.broadcast %c0_i32_13 : i32 to vector<16x1xi32>
    %47 = arith.cmpi sge, %45, %46 : vector<16x1xi32>
    %c1_i32_14 = arith.constant 1 : i32
    %48 = vector.broadcast %c1_i32_14 : i32 to vector<16x1xi32>
    %49 = arith.addi %16, %48 : vector<16x1xi32>
    %c16_i32_15 = arith.constant 16 : i32
    %50 = vector.broadcast %c16_i32_15 : i32 to vector<16x1xi32>
    %51 = arith.cmpi slt, %49, %50 : vector<16x1xi32>
    %52 = arith.andi %47, %51 : vector<16x1xi1>
    %c2_i32 = arith.constant 2 : i32
    %53 = vector.broadcast %c2_i32 : i32 to vector<16x1xi32>
    %54 = arith.addi %16, %53 : vector<16x1xi32>
    %c0_i32_16 = arith.constant 0 : i32
    %55 = vector.broadcast %c0_i32_16 : i32 to vector<16x1xi32>
    %56 = arith.cmpi sge, %54, %55 : vector<16x1xi32>
    %c2_i32_17 = arith.constant 2 : i32
    %57 = vector.broadcast %c2_i32_17 : i32 to vector<16x1xi32>
    %58 = arith.addi %16, %57 : vector<16x1xi32>
    %c16_i32_18 = arith.constant 16 : i32
    %59 = vector.broadcast %c16_i32_18 : i32 to vector<16x1xi32>
    %60 = arith.cmpi slt, %58, %59 : vector<16x1xi32>
    %61 = arith.andi %56, %60 : vector<16x1xi1>
    %c0 = arith.constant 0 : index
    %c0_19 = arith.constant 0 : index
    %62 = vector.load %arg1[%c0, %c0_19] : memref<16x256xbf16, #tpu.memory_space<vmem>>, vector<16x256xbf16>
    %c0_20 = arith.constant 0 : index
    %c0_21 = arith.constant 0 : index
    %63 = vector.load %arg2[%c0_20, %c0_21] : memref<272x256xf32, #tpu.memory_space<vmem>>, vector<16x256xf32>
    %64 = arith.truncf %63 : vector<16x256xf32> to vector<16x256xbf16>
    %cst = arith.constant dense<0.000000e+00> : vector<16x16xf32>
    %65 = tpu.matmul %62, %64, %cst {dimension_numbers = #tpu.dot_dimension_numbers<[1], [1], [0], [0], [0, 0, 1, 0], [], []>} : vector<16x256xbf16>, vector<16x256xbf16>, vector<16x16xf32> -> vector<16x16xf32>
    %c0_22 = arith.constant 0 : index
    %c0_23 = arith.constant 0 : index
    %66 = vector.load %arg3[%c0_22, %c0_23] : memref<16x128xf32, #tpu.memory_space<vmem>>, vector<1x16xf32>
    %67 = vector.broadcast %66 : vector<1x16xf32> to vector<16x16xf32>
    %68 = arith.addf %65, %67 : vector<16x16xf32>
    %c2_i32_24 = arith.constant 2 : i32
    %69 = tpu.dynamic_rotate %68 by %c2_i32_24 dim 0 : vector<16x16xf32>, i32 -> vector<16x16xf32>
    %cst_25 = arith.constant 0.000000e+00 : f32
    %70 = vector.shape_cast %34 : vector<16x1xi1> to vector<16x1xi1>
    %71 = vector.broadcast %70 : vector<16x1xi1> to vector<16x16xi1>
    %72 = vector.broadcast %cst_25 : f32 to vector<16x16xf32>
    %73 = arith.select %71, %69, %72 : vector<16x16xi1>, vector<16x16xf32>
    %c1_i32_26 = arith.constant 1 : i32
    %74 = tpu.dynamic_rotate %68 by %c1_i32_26 dim 0 : vector<16x16xf32>, i32 -> vector<16x16xf32>
    %cst_27 = arith.constant 0.000000e+00 : f32
    %75 = vector.shape_cast %43 : vector<16x1xi1> to vector<16x1xi1>
    %76 = vector.broadcast %75 : vector<16x1xi1> to vector<16x16xi1>
    %77 = vector.broadcast %cst_27 : f32 to vector<16x16xf32>
    %78 = arith.select %76, %74, %77 : vector<16x16xi1>, vector<16x16xf32>
    %c15_i32 = arith.constant 15 : i32
    %79 = tpu.dynamic_rotate %68 by %c15_i32 dim 0 : vector<16x16xf32>, i32 -> vector<16x16xf32>
    %cst_28 = arith.constant 0.000000e+00 : f32
    %80 = vector.shape_cast %52 : vector<16x1xi1> to vector<16x1xi1>
    %81 = vector.broadcast %80 : vector<16x1xi1> to vector<16x16xi1>
    %82 = vector.broadcast %cst_28 : f32 to vector<16x16xf32>
    %83 = arith.select %81, %79, %82 : vector<16x16xi1>, vector<16x16xf32>
    %c14_i32 = arith.constant 14 : i32
    %84 = tpu.dynamic_rotate %68 by %c14_i32 dim 0 : vector<16x16xf32>, i32 -> vector<16x16xf32>
    %cst_29 = arith.constant 0.000000e+00 : f32
    %85 = vector.shape_cast %61 : vector<16x1xi1> to vector<16x1xi1>
    %86 = vector.broadcast %85 : vector<16x1xi1> to vector<16x16xi1>
    %87 = vector.broadcast %cst_29 : f32 to vector<16x16xf32>
    %88 = arith.select %86, %84, %87 : vector<16x16xi1>, vector<16x16xf32>
    %89 = tpu.concatenate %73, %78, %68, %83, %88 in 1 : vector<16x16xf32>, vector<16x16xf32>, vector<16x16xf32>, vector<16x16xf32>, vector<16x16xf32> -> vector<16x80xf32>
    %c16 = arith.constant 16 : index
    %c0_30 = arith.constant 0 : index
    %90 = vector.load %arg2[%c16, %c0_30] : memref<272x256xf32, #tpu.memory_space<vmem>>, vector<80x32xf32>
    %cst_31 = arith.constant dense<0.000000e+00> : vector<16x32xf32>
    %91 = tpu.matmul %89, %90, %cst_31 {dimension_numbers = #tpu.dot_dimension_numbers<[1], [0], [0], [1], [0, 0, 1, 1], [], []>} : vector<16x80xf32>, vector<80x32xf32>, vector<16x32xf32> -> vector<16x32xf32>
    %c1 = arith.constant 1 : index
    %c0_32 = arith.constant 0 : index
    %92 = vector.load %arg3[%c1, %c0_32] : memref<16x128xf32, #tpu.memory_space<vmem>>, vector<1x32xf32>
    %93 = vector.broadcast %92 : vector<1x32xf32> to vector<16x32xf32>
    %94 = arith.addf %91, %93 : vector<16x32xf32>
    %c96 = arith.constant 96 : index
    %c0_33 = arith.constant 0 : index
    %95 = vector.load %arg2[%c96, %c0_33] : memref<272x256xf32, #tpu.memory_space<vmem>>, vector<32x32xf32>
    %cst_34 = arith.constant dense<0.000000e+00> : vector<16x32xf32>
    %96 = tpu.matmul %94, %95, %cst_34 {dimension_numbers = #tpu.dot_dimension_numbers<[1], [0], [0], [1], [0, 0, 1, 1], [], []>} : vector<16x32xf32>, vector<32x32xf32>, vector<16x32xf32> -> vector<16x32xf32>
    %c2 = arith.constant 2 : index
    %c0_35 = arith.constant 0 : index
    %97 = vector.load %arg3[%c2, %c0_35] : memref<16x128xf32, #tpu.memory_space<vmem>>, vector<1x32xf32>
    %98 = vector.broadcast %97 : vector<1x32xf32> to vector<16x32xf32>
    %99 = arith.addf %96, %98 : vector<16x32xf32>
    %cst_36 = arith.constant 0.000000e+00 : f32
    %100 = vector.broadcast %cst_36 : f32 to vector<16x32xf32>
    %101 = arith.maximumf %99, %100 : vector<16x32xf32>
    %c3 = arith.constant 3 : index
    %c0_37 = arith.constant 0 : index
    %102 = vector.load %arg3[%c3, %c0_37] : memref<16x128xf32, #tpu.memory_space<vmem>>, vector<1x32xf32>
    %103 = vector.broadcast %102 : vector<1x32xf32> to vector<16x32xf32>
    %104 = arith.mulf %101, %103 : vector<16x32xf32>
    %c4 = arith.constant 4 : index
    %c0_38 = arith.constant 0 : index
    %105 = vector.load %arg3[%c4, %c0_38] : memref<16x128xf32, #tpu.memory_space<vmem>>, vector<1x32xf32>
    %106 = vector.broadcast %105 : vector<1x32xf32> to vector<16x32xf32>
    %107 = arith.addf %104, %106 : vector<16x32xf32>
    %c4_i32 = arith.constant 4 : i32
    %108 = tpu.dynamic_rotate %107 by %c4_i32 dim 0 : vector<16x32xf32>, i32 -> vector<16x32xf32>
    %cst_39 = arith.constant 0.000000e+00 : f32
    %109 = vector.shape_cast %25 : vector<16x1xi1> to vector<16x1xi1>
    %110 = vector.broadcast %109 : vector<16x1xi1> to vector<16x32xi1>
    %111 = vector.broadcast %cst_39 : f32 to vector<16x32xf32>
    %112 = arith.select %110, %108, %111 : vector<16x32xi1>, vector<16x32xf32>
    %c2_i32_40 = arith.constant 2 : i32
    %113 = tpu.dynamic_rotate %107 by %c2_i32_40 dim 0 : vector<16x32xf32>, i32 -> vector<16x32xf32>
    %cst_41 = arith.constant 0.000000e+00 : f32
    %114 = vector.shape_cast %34 : vector<16x1xi1> to vector<16x1xi1>
    %115 = vector.broadcast %114 : vector<16x1xi1> to vector<16x32xi1>
    %116 = vector.broadcast %cst_41 : f32 to vector<16x32xf32>
    %117 = arith.select %115, %113, %116 : vector<16x32xi1>, vector<16x32xf32>
    %118 = tpu.concatenate %112, %117, %107 in 1 : vector<16x32xf32>, vector<16x32xf32>, vector<16x32xf32> -> vector<16x96xf32>
    %c128 = arith.constant 128 : index
    %c0_42 = arith.constant 0 : index
    %119 = vector.load %arg2[%c128, %c0_42] : memref<272x256xf32, #tpu.memory_space<vmem>>, vector<96x32xf32>
    %cst_43 = arith.constant dense<0.000000e+00> : vector<16x32xf32>
    %120 = tpu.matmul %118, %119, %cst_43 {dimension_numbers = #tpu.dot_dimension_numbers<[1], [0], [0], [1], [0, 0, 1, 1], [], []>} : vector<16x96xf32>, vector<96x32xf32>, vector<16x32xf32> -> vector<16x32xf32>
    %c5 = arith.constant 5 : index
    %c0_44 = arith.constant 0 : index
    %121 = vector.load %arg3[%c5, %c0_44] : memref<16x128xf32, #tpu.memory_space<vmem>>, vector<1x32xf32>
    %122 = vector.broadcast %121 : vector<1x32xf32> to vector<16x32xf32>
    %123 = arith.addf %120, %122 : vector<16x32xf32>
    %124 = vector.extract_strided_slice %123 {offsets = [0, 0], sizes = [16, 16], strides = [1, 1]} : vector<16x32xf32> to vector<16x16xf32>
    %125 = vector.extract_strided_slice %123 {offsets = [0, 16], sizes = [16, 16], strides = [1, 1]} : vector<16x32xf32> to vector<16x16xf32>
    %126 = arith.addf %124, %125 : vector<16x16xf32>
    %c224 = arith.constant 224 : index
    %c0_45 = arith.constant 0 : index
    %127 = vector.load %arg2[%c224, %c0_45] : memref<272x256xf32, #tpu.memory_space<vmem>>, vector<16x48xf32>
    %cst_46 = arith.constant dense<0.000000e+00> : vector<16x48xf32>
    %128 = tpu.matmul %126, %127, %cst_46 {dimension_numbers = #tpu.dot_dimension_numbers<[1], [0], [0], [1], [0, 0, 1, 1], [], []>} : vector<16x16xf32>, vector<16x48xf32>, vector<16x48xf32> -> vector<16x48xf32>
    %c6 = arith.constant 6 : index
    %c0_47 = arith.constant 0 : index
    %129 = vector.load %arg3[%c6, %c0_47] : memref<16x128xf32, #tpu.memory_space<vmem>>, vector<1x48xf32>
    %130 = vector.broadcast %129 : vector<1x48xf32> to vector<16x48xf32>
    %131 = arith.addf %128, %130 : vector<16x48xf32>
    %132 = vector.shape_cast %131 : vector<16x48xf32> to vector<1x16x48xf32>
    %133 = vector.extract_strided_slice %132 {offsets = [0, 0, 0], sizes = [1, 16, 4], strides = [1, 1, 1]} : vector<1x16x48xf32> to vector<1x16x4xf32>
    %134 = vector.extract_strided_slice %132 {offsets = [0, 0, 4], sizes = [1, 16, 4], strides = [1, 1, 1]} : vector<1x16x48xf32> to vector<1x16x4xf32>
    %135 = vector.extract_strided_slice %132 {offsets = [0, 0, 8], sizes = [1, 16, 4], strides = [1, 1, 1]} : vector<1x16x48xf32> to vector<1x16x4xf32>
    %136 = vector.extract_strided_slice %132 {offsets = [0, 0, 12], sizes = [1, 16, 4], strides = [1, 1, 1]} : vector<1x16x48xf32> to vector<1x16x4xf32>
    %137 = tpu.concatenate %133, %134, %135, %136 in 0 : vector<1x16x4xf32>, vector<1x16x4xf32>, vector<1x16x4xf32>, vector<1x16x4xf32> -> vector<4x16x4xf32>
    %cst_48 = arith.constant 5.000000e-01 : f32
    %138 = vector.broadcast %cst_48 : f32 to vector<4x16x4xf32>
    %139 = arith.mulf %137, %138 : vector<4x16x4xf32>
    %140 = vector.extract_strided_slice %132 {offsets = [0, 0, 16], sizes = [1, 16, 4], strides = [1, 1, 1]} : vector<1x16x48xf32> to vector<1x16x4xf32>
    %141 = vector.extract_strided_slice %132 {offsets = [0, 0, 20], sizes = [1, 16, 4], strides = [1, 1, 1]} : vector<1x16x48xf32> to vector<1x16x4xf32>
    %142 = vector.extract_strided_slice %132 {offsets = [0, 0, 24], sizes = [1, 16, 4], strides = [1, 1, 1]} : vector<1x16x48xf32> to vector<1x16x4xf32>
    %143 = vector.extract_strided_slice %132 {offsets = [0, 0, 28], sizes = [1, 16, 4], strides = [1, 1, 1]} : vector<1x16x48xf32> to vector<1x16x4xf32>
    %144 = tpu.concatenate %140, %141, %142, %143 in 0 : vector<1x16x4xf32>, vector<1x16x4xf32>, vector<1x16x4xf32>, vector<1x16x4xf32> -> vector<4x16x4xf32>
    %145 = vector.extract_strided_slice %132 {offsets = [0, 0, 32], sizes = [1, 16, 4], strides = [1, 1, 1]} : vector<1x16x48xf32> to vector<1x16x4xf32>
    %146 = vector.extract_strided_slice %132 {offsets = [0, 0, 36], sizes = [1, 16, 4], strides = [1, 1, 1]} : vector<1x16x48xf32> to vector<1x16x4xf32>
    %147 = vector.extract_strided_slice %132 {offsets = [0, 0, 40], sizes = [1, 16, 4], strides = [1, 1, 1]} : vector<1x16x48xf32> to vector<1x16x4xf32>
    %148 = vector.extract_strided_slice %132 {offsets = [0, 0, 44], sizes = [1, 16, 4], strides = [1, 1, 1]} : vector<1x16x48xf32> to vector<1x16x4xf32>
    %149 = tpu.concatenate %145, %146, %147, %148 in 0 : vector<1x16x4xf32>, vector<1x16x4xf32>, vector<1x16x4xf32>, vector<1x16x4xf32> -> vector<4x16x4xf32>
    %cst_49 = arith.constant dense<0.000000e+00> : vector<4x16x16xf32>
    %150 = tpu.matmul %139, %144, %cst_49 {dimension_numbers = #tpu.dot_dimension_numbers<[2], [2], [1], [1], [0, 0, 0, 1, 1, 1], [0], [0]>} : vector<4x16x4xf32>, vector<4x16x4xf32>, vector<4x16x16xf32> -> vector<4x16x16xf32>
    %cst_50 = arith.constant dense<0xFF800000> : vector<4x16xf32>
    %151 = vector.multi_reduction <maximumf>, %150, %cst_50 [2] : vector<4x16x16xf32> to vector<4x16xf32>
    %152 = vector.shape_cast %151 : vector<4x16xf32> to vector<4x16x1xf32>
    %153 = vector.broadcast %152 : vector<4x16x1xf32> to vector<4x16x16xf32>
    %154 = arith.subf %150, %153 : vector<4x16x16xf32>
    %155 = math.exp %154 : vector<4x16x16xf32>
    %cst_51 = arith.constant dense<0.000000e+00> : vector<4x16xf32>
    %156 = vector.multi_reduction <add>, %155, %cst_51 [2] : vector<4x16x16xf32> to vector<4x16xf32>
    %157 = vector.shape_cast %156 : vector<4x16xf32> to vector<4x16x1xf32>
    %158 = tpu.reciprocal %157 {approx = true} : vector<4x16x1xf32> -> vector<4x16x1xf32>
    %159 = vector.broadcast %158 : vector<4x16x1xf32> to vector<4x16x16xf32>
    %160 = arith.mulf %155, %159 : vector<4x16x16xf32>
    %cst_52 = arith.constant dense<0.000000e+00> : vector<4x16x4xf32>
    %161 = tpu.matmul %160, %149, %cst_52 {dimension_numbers = #tpu.dot_dimension_numbers<[2], [1], [1], [2], [0, 0, 0, 1, 1, 2], [0], [0]>} : vector<4x16x16xf32>, vector<4x16x4xf32>, vector<4x16x4xf32> -> vector<4x16x4xf32>
    %162 = vector.extract_strided_slice %161 {offsets = [0, 0, 0], sizes = [1, 16, 4], strides = [1, 1, 1]} : vector<4x16x4xf32> to vector<1x16x4xf32>
    %163 = vector.extract_strided_slice %161 {offsets = [1, 0, 0], sizes = [1, 16, 4], strides = [1, 1, 1]} : vector<4x16x4xf32> to vector<1x16x4xf32>
    %164 = vector.extract_strided_slice %161 {offsets = [2, 0, 0], sizes = [1, 16, 4], strides = [1, 1, 1]} : vector<4x16x4xf32> to vector<1x16x4xf32>
    %165 = vector.extract_strided_slice %161 {offsets = [3, 0, 0], sizes = [1, 16, 4], strides = [1, 1, 1]} : vector<4x16x4xf32> to vector<1x16x4xf32>
    %166 = tpu.concatenate %162, %163, %164, %165 in 2 : vector<1x16x4xf32>, vector<1x16x4xf32>, vector<1x16x4xf32>, vector<1x16x4xf32> -> vector<1x16x16xf32>
    %167 = vector.shape_cast %166 : vector<1x16x16xf32> to vector<16x16xf32>
    %c240 = arith.constant 240 : index
    %c0_53 = arith.constant 0 : index
    %168 = vector.load %arg2[%c240, %c0_53] : memref<272x256xf32, #tpu.memory_space<vmem>>, vector<16x16xf32>
    %cst_54 = arith.constant dense<0.000000e+00> : vector<16x16xf32>
    %169 = tpu.matmul %167, %168, %cst_54 {dimension_numbers = #tpu.dot_dimension_numbers<[1], [0], [0], [1], [0, 0, 1, 1], [], []>} : vector<16x16xf32>, vector<16x16xf32>, vector<16x16xf32> -> vector<16x16xf32>
    %c7 = arith.constant 7 : index
    %c0_55 = arith.constant 0 : index
    %170 = vector.load %arg3[%c7, %c0_55] : memref<16x128xf32, #tpu.memory_space<vmem>>, vector<1x16xf32>
    %171 = vector.broadcast %170 : vector<1x16xf32> to vector<16x16xf32>
    %172 = arith.addf %169, %171 : vector<16x16xf32>
    %c256 = arith.constant 256 : index
    %c0_56 = arith.constant 0 : index
    %173 = vector.load %arg2[%c256, %c0_56] : memref<272x256xf32, #tpu.memory_space<vmem>>, vector<16x8xf32>
    %cst_57 = arith.constant dense<0.000000e+00> : vector<16x8xf32>
    %174 = tpu.matmul %172, %173, %cst_57 {dimension_numbers = #tpu.dot_dimension_numbers<[1], [0], [0], [1], [0, 0, 1, 1], [], []>} : vector<16x16xf32>, vector<16x8xf32>, vector<16x8xf32> -> vector<16x8xf32>
    %c8 = arith.constant 8 : index
    %c0_58 = arith.constant 0 : index
    %175 = vector.load %arg3[%c8, %c0_58] : memref<16x128xf32, #tpu.memory_space<vmem>>, vector<1x8xf32>
    %176 = vector.broadcast %175 : vector<1x8xf32> to vector<16x8xf32>
    %177 = arith.addf %174, %176 : vector<16x8xf32>
    %c0_59 = arith.constant 0 : index
    %c0_60 = arith.constant 0 : index
    %178 = vector.load %arg4[%c0_59, %c0_60] : memref<16x8xf32, #tpu.memory_space<vmem>>, vector<16x8xf32>
    tpu.vector_store %arg4[%c0_59, %c0_60], %177 {strides = array<i32>} : memref<16x8xf32, #tpu.memory_space<vmem>>, vector<16x8xf32>,
    return
  }
  func.func @transform_0(%arg0: i32) -> (i32, i32) {
    %c0_i32 = arith.constant 0 : i32
    %c0_i32_0 = arith.constant 0 : i32
    return %arg0, %c0_i32 : i32, i32
  }
  func.func @transform_1(%arg0: i32) -> (i32, i32) {
    %c0_i32 = arith.constant 0 : i32
    %c0_i32_0 = arith.constant 0 : i32
    %c0_i32_1 = arith.constant 0 : i32
    return %c0_i32, %c0_i32_0 : i32, i32
  }
  func.func @transform_2(%arg0: i32) -> (i32, i32) {
    %c0_i32 = arith.constant 0 : i32
    %c0_i32_0 = arith.constant 0 : i32
    %c0_i32_1 = arith.constant 0 : i32
    return %c0_i32, %c0_i32_0 : i32, i32
  }
  func.func @transform_3(%arg0: i32) -> (i32, i32) {
    %c0_i32 = arith.constant 0 : i32
    %c0_i32_0 = arith.constant 0 : i32
    return %arg0, %c0_i32 : i32, i32
  }
}

</mosaic_0001>

<llo_original>
// kernel: tpu_custom_call.1
$region0: #{tpu_custom_call.1}
  #allocation0 [shape = 'u32[]', space=smem, size = 0x4, offset = 0x4, fixed_abs, tag = 'smem constant byte address 0x4 - core index']
  #allocation1 [shape = 'u32[72,128]{1,0:T(1,128)}', space=vmem, size = 0x9000, scoped, tag = 'internal scratch']
  %s0 = inlined_call_operand.hbm [shape: bf16[32,256], index: 0, kind: input, shape index: {}]
  %s1 = inlined_call_operand.hbm [shape: f32[272,256], index: 1, kind: input, shape index: {}]
  %s2 = inlined_call_operand.hbm [shape: f32[16,128], index: 2, kind: input, shape index: {}]
  %s3 = inlined_call_operand.vmem [shape: f32[32,8], index: 3, kind: output, shape index: {}]
  %s4 = sld [smem:[#allocation0]]
  $region57: #{tpu_custom_call.1} parent=0
    _
  %s6 = ssub.s32 1, %s4
  %s7 = scalar_select 0, %s6, %s4
  $region1: #{tpu_custom_call.1} parent=0
    #allocation2 [shape = 'u8[16384]{0}', space=vmem, size = 0x4000, scoped, tag = 'input window, operand 0']
    #allocation3 [shape = 's32[2]{0}', space=sflag, size = 0x8, scoped, tag = 'scoped memory for tpu_custom_call.1']
    #allocation4 [shape = 'u8[278528]{0}', space=vmem, size = 0x44000, scoped, tag = 'input window, operand 1, single buffered']
    #allocation5 [shape = 's32[1]{0}', space=sflag, size = 0x4, scoped, tag = 'scoped memory for tpu_custom_call.1']
    #allocation6 [shape = 'u8[8192]{0}', space=vmem, size = 0x2000, scoped, tag = 'input window, operand 2, single buffered']
    %8 = vsyncpa [#allocation3], 0
    %s9 = scalar_lea.sflag [#allocation3], 1
    %10 = vsyncpa %s9, 0
    %11 = vsyncpa [#allocation5], 0
    loop: start=0, step=1, limit=4
    $region2: #{tpu_custom_call.1} parent=1 // loop_pre_header
      _
    $region3: #{tpu_custom_call.1} parent=1 // loop_header
      %s13 = sphi 0, %s17
      %p14 = scmp.ge.s32.totalorder %s13, 4
      %s23 = sphi 0, %s25
      %s26 = sphi 0, %s23
      %s27 = sphi 0, %s26
      %s43 = sphi 0, %s27
      %s47 = sphi 0, %s47
      %s49 = sphi 0, %s47
      %s50 = sphi 0, %s49
      %s64 = sphi 0, %s50
      %s68 = sphi 0, %s68
      %s70 = sphi 0, %s68
      %s71 = sphi 0, %s70
      %s85 = sphi 0, %s71
      %s91 = sphi 0, %s93
      %s94 = sphi 0, %s91
      %s95 = sphi 0, %s94
      %s111 = sphi 0, %s95
    $region4: #{tpu_custom_call.1} parent=1 // loop_header_branch
      %16 = sbr.rel (%p14) target = $region8
    $region5: #{tpu_custom_call.1} parent=1 // loop_body
      %s18 = ssub.s32 %s13, 1
      %s19 = ssub.s32 %s13, 2
      %s20 = sadd.s32 %s13, 1
      %s21 = ssub.s32 %s13, %s20
      %p22 = scmp.eq.s32.totalorder %s21, 0
      %s24 = sadd.s32 %s23, 1
      %s25 = scalar_select %p22, %s23, %s24
      %p28 = pneg %p22
      %p29 = scmp.eq.s32.totalorder %s13, 1
      %p30 = por %p28, %p29
      %p31 = scmp.ne.s32.totalorder %s23, %s26
      %p32 = scmp.eq.s32.totalorder %s13, 0
      %p33 = por %p31, %p32
      %p34 = scmp.ne.s32.totalorder %s23, %s26
      %p35 = scmp.eq.s32.totalorder %s18, 1
      %p36 = por %p34, %p35
      %p37 = scmp.ne.s32.totalorder %s26, %s27
      %p38 = scmp.eq.s32.totalorder %s18, 0
      %p39 = por %p37, %p38
      %p40 = scmp.ne.s32.totalorder %s26, %s27
      %p41 = scmp.eq.s32.totalorder %s19, 1
      %p42 = por %p40, %p41
      %p44 = scmp.ne.s32.totalorder %s27, %s43
      %p45 = scmp.eq.s32.totalorder %s19, 0
      %p46 = por %p44, %p45
      %s48 = sadd.s32 %s47, 1
      %p51 = scmp.eq.s32.totalorder %s13, 1
      %p52 = scmp.ne.s32.totalorder %s47, %s49
      %p53 = scmp.eq.s32.totalorder %s13, 0
      %p54 = por %p52, %p53
      %p55 = scmp.ne.s32.totalorder %s47, %s49
      %p56 = scmp.eq.s32.totalorder %s18, 1
      %p57 = por %p55, %p56
      %p58 = scmp.ne.s32.totalorder %s49, %s50
      %p59 = scmp.eq.s32.totalorder %s18, 0
      %p60 = por %p58, %p59
      %p61 = scmp.ne.s32.totalorder %s49, %s50
      %p62 = scmp.eq.s32.totalorder %s19, 1
      %p63 = por %p61, %p62
      %p65 = scmp.ne.s32.totalorder %s50, %s64
      %p66 = scmp.eq.s32.totalorder %s19, 0
      %p67 = por %p65, %p66
      %s69 = sadd.s32 %s68, 1
      %p72 = scmp.eq.s32.totalorder %s13, 1
      %p73 = scmp.ne.s32.totalorder %s68, %s70
      %p74 = scmp.eq.s32.totalorder %s13, 0
      %p75 = por %p73, %p74
      %p76 = scmp.ne.s32.totalorder %s68, %s70
      %p77 = scmp.eq.s32.totalorder %s18, 1
      %p78 = por %p76, %p77
      %p79 = scmp.ne.s32.totalorder %s70, %s71
      %p80 = scmp.eq.s32.totalorder %s18, 0
      %p81 = por %p79, %p80
      %p82 = scmp.ne.s32.totalorder %s70, %s71
      %p83 = scmp.eq.s32.totalorder %s19, 1
      %p84 = por %p82, %p83
      %p86 = scmp.ne.s32.totalorder %s71, %s85
      %p87 = scmp.eq.s32.totalorder %s19, 0
      %p88 = por %p86, %p87
      %s89 = ssub.s32 %s13, %s20
      %p90 = scmp.eq.s32.totalorder %s89, 0
      %s92 = sadd.s32 %s91, 1
      %s93 = scalar_select %p90, %s91, %s92
      %p96 = pneg %p90
      %p97 = scmp.eq.s32.totalorder %s13, 1
      %p98 = por %p96, %p97
      %p99 = scmp.ne.s32.totalorder %s91, %s94
      %p100 = scmp.eq.s32.totalorder %s13, 0
      %p101 = por %p99, %p100
      %p102 = scmp.ne.s32.totalorder %s91, %s94
      %p103 = scmp.eq.s32.totalorder %s18, 1
      %p104 = por %p102, %p103
      %p105 = scmp.ne.s32.totalorder %s94, %s95
      %p106 = scmp.eq.s32.totalorder %s18, 0
      %p107 = por %p105, %p106
      %p108 = scmp.ne.s32.totalorder %s94, %s95
      %p109 = scmp.eq.s32.totalorder %s19, 1
      %p110 = por %p108, %p109
      %p112 = scmp.ne.s32.totalorder %s95, %s111
      %p113 = scmp.eq.s32.totalorder %s19, 0
      %p114 = por %p112, %p113
      %p115 = scmp.le.s32.totalorder 1, %s13
      %p116 = scmp.lt.s32.totalorder %s13, 3
      %p117 = pnand %p115, %p116
      %p118 = pneg %p117
      // Predicated region
      $region9: #{tpu_custom_call.1} parent=5 // pred_check
        _
      $region10: #{tpu_custom_call.1} parent=5 // pred_check_branch
        %120 = sbr.rel (%p117) target = $region12
      $region11: #{tpu_custom_call.1} parent=5 // pred_region
        %s121 = ssub.s32 %s13, 1
        // Predicated region
        $region13: #{tpu_custom_call.1} parent=11 // pred_check
          %p122 = pneg %p60
        $region14: #{tpu_custom_call.1} parent=11 // pred_check_branch
          %124 = sbr.rel (%p122) target = $region16
        $region15: #{tpu_custom_call.1} parent=11 // pred_region
          %126 = vsyncadd [#allocation5], 0
          %s127 = sshll.u32 %s1, 4
          %s128 = int_to_ptr.hbm [resolvable:$true] %s127
          %s129 = sshll.u32 [#allocation4], 4
          %s130 = int_to_ptr.vmem [resolvable:$true] %s129
          %135 = dma.hbm_to_vmem [thread:$0]  %s128, 8704, %s130, [#allocation5], 256, 256, 16
        $region16: #{tpu_custom_call.1} parent=11 // pred_fallthru
          _
        // Predicated region
        $region17: #{tpu_custom_call.1} parent=11 // pred_check
          %p136 = pneg %p81
        $region18: #{tpu_custom_call.1} parent=11 // pred_check_branch
          %138 = sbr.rel (%p136) target = $region20
        $region19: #{tpu_custom_call.1} parent=11 // pred_region
          %140 = vsyncadd [#allocation5], 0
          %s141 = sshll.u32 %s2, 4
          %s142 = int_to_ptr.hbm [resolvable:$true] %s141
          %s143 = sshll.u32 [#allocation6], 4
          %s144 = int_to_ptr.vmem [resolvable:$true] %s143
          %149 = dma.hbm_to_vmem [thread:$0]  %s142, 256, %s144, [#allocation5], 128, 128, 8
        $region20: #{tpu_custom_call.1} parent=11 // pred_fallthru
          _
      $region12: #{tpu_custom_call.1} parent=5 // pred_fallthru
        _
      %p150 = scmp.lt.s32.totalorder %s13, 2
      // Predicated region
      $region21: #{tpu_custom_call.1} parent=5 // pred_check
        %p151 = pneg %p150
      $region22: #{tpu_custom_call.1} parent=5 // pred_check_branch
        %153 = sbr.rel (%p151) target = $region24
      $region23: #{tpu_custom_call.1} parent=5 // pred_region
        // Predicated region
        $region25: #{tpu_custom_call.1} parent=23 // pred_check
          %p154 = pneg %p33
        $region26: #{tpu_custom_call.1} parent=23 // pred_check_branch
          %156 = sbr.rel (%p154) target = $region28
        $region27: #{tpu_custom_call.1} parent=23 // pred_region
          %s157 = sand.u32 %s23, 1
          %s158 = scalar_lea.sflag [#allocation3], %s157
          %s159 = sand.u32 %s23, 1
          %s160 = smul.addr %s159, 16
          %s161 = scalar_lea.vmem [#allocation2], %s160
          %s162 = smul.u32 2, %s13
          %164 = vsyncadd %s158, 0
          %s165 = smul.addr %s162, 2
          %s166 = smul.addr %s165, 4
          %s167 = scalar_lea.hbm %s0, %s166
          %s168 = sshll.u32 %s167, 4
          %s169 = int_to_ptr.hbm [resolvable:$true] %s168
          %s170 = sshll.u32 %s161, 4
          %s171 = int_to_ptr.vmem [resolvable:$true] %s170
          %176 = dma.hbm_to_vmem [thread:$0]  %s169, 256, %s171, %s158, 128, 128, 8
        $region28: #{tpu_custom_call.1} parent=23 // pred_fallthru
          _
      $region24: #{tpu_custom_call.1} parent=5 // pred_fallthru
        _
      %p177 = scmp.le.s32.totalorder 1, %s13
      %p178 = scmp.lt.s32.totalorder %s13, 3
      %p179 = pnand %p177, %p178
      %p180 = pneg %p179
      // Predicated region
      $region29: #{tpu_custom_call.1} parent=5 // pred_check
        _
      $region30: #{tpu_custom_call.1} parent=5 // pred_check_branch
        %182 = sbr.rel (%p179) target = $region32
      $region31: #{tpu_custom_call.1} parent=5 // pred_region
        %s183 = ssub.s32 %s13, 1
        %s184 = sand.u32 %s26, 1
        %s185 = scalar_lea.sflag [#allocation3], %s184
        %s186 = sand.u32 %s26, 1
        %s187 = smul.addr %s186, 16
        %s188 = scalar_lea.vmem [#allocation2], %s187
        // Predicated region
        $region33: #{tpu_custom_call.1} parent=31 // pred_check
          %p189 = pneg %p39
        $region34: #{tpu_custom_call.1} parent=31 // pred_check_branch
          %191 = sbr.rel (%p189) target = $region36
        $region35: #{tpu_custom_call.1} parent=31 // pred_region
          %193 = dma.done %s185, 256
        $region36: #{tpu_custom_call.1} parent=31 // pred_fallthru
          _
        // Predicated region
        $region37: #{tpu_custom_call.1} parent=31 // pred_check
          %p194 = pneg %p60
        $region38: #{tpu_custom_call.1} parent=31 // pred_check_branch
          %196 = sbr.rel (%p194) target = $region40
        $region39: #{tpu_custom_call.1} parent=31 // pred_region
          %198 = dma.done [#allocation5], 8704
        $region40: #{tpu_custom_call.1} parent=31 // pred_fallthru
          _
        // Predicated region
        $region41: #{tpu_custom_call.1} parent=31 // pred_check
          %p199 = pneg %p81
        $region42: #{tpu_custom_call.1} parent=31 // pred_check_branch
          %201 = sbr.rel (%p199) target = $region44
        $region43: #{tpu_custom_call.1} parent=31 // pred_region
          %203 = dma.done [#allocation5], 256
        $region44: #{tpu_custom_call.1} parent=31 // pred_fallthru
          _
        %s204 = sand.u32 %s26, 1
        %s205 = scalar_lea.sflag [#allocation3], %s204
        %s206 = sand.u32 %s26, 1
        %s207 = smul.addr %s206, 16
        %s208 = scalar_lea.vmem [#allocation2], %s207
        %p209 = pneg %p39
        %p210 = pneg %p36
        %p211 = pneg %p60
        %p212 = pneg %p57
        %p213 = pneg %p81
        %p214 = pneg %p78
        %p215 = pneg %p107
        %p216 = pneg %p104
        %s217 = smul.u32 2, %s18
        %p218 = scmp.lt.s32.totalorder %s217, 3
        %s219 = scalar_select %p218, %s217, 3
        %s220 = smul.addr %s219, 8
        %s221 = scalar_lea.vmem %s3, %s220
        %s222 = smul.u32 2, %s18
        %s223 = smul.u32 2, %s18
        %p224 = scmp.lt.s32.totalorder %s223, 3
        %s225 = scalar_select %p224, %s223, 3
        %s226 = smul.addr %s225, 8
        %s227 = scalar_lea.vmem %s3, %s226
        %s228 = smul.u32 2, %s18
        %v230 = vlaneseq
        %v231 = vshrl.u32 %v230, 7
        %v232 = vadd.s32 %v231, 8
        %vm233 = vcmp.lt.s32.totalorder %v231, 0
        %v234 = vsub.s32 0, %v231
        %v235 = vsel %vm233, %v234, %v231
        %v236 = vshrl.u32 %v235, 4
        %v237 = vand.u32 %v235, 15
        %v238 = vsub.s32 0, %v237
        %v239 = vsel %vm233, %v238, %v237
        %vm240 = vcmp.lt.s32.totalorder %v232, 0
        %v241 = vsub.s32 0, %v232
        %v242 = vsel %vm240, %v241, %v232
        %v243 = vshrl.u32 %v242, 4
        %v244 = vand.u32 %v242, 15
        %v245 = vsub.s32 0, %v244
        %v246 = vsel %vm240, %v245, %v244
        %vm247 = vcmp.ne.s32.totalorder %v239, 0
        %vm248 = vcmp.ne.s32.totalorder %v246, 0
        %vm249 = vcmp.lt.s32.totalorder %v239, 0
        %vm250 = vcmp.lt.s32.totalorder %v246, 0
        %vm251 = vmand %vm249, %vm247
        %vm252 = vmand %vm250, %vm248
        %v253 = vadd.s32 %v239, 16
        %v254 = vadd.s32 %v246, 16
        %v255 = vsel %vm251, %v253, %v239
        %v256 = vsel %vm252, %v254, %v246
        %v257 = vadd.s32 %v255, 4294967292
        %v258 = vadd.s32 %v256, 4294967292
        %vm259 = vcmp.ge.s32.totalorder %v257, 0
        %vm260 = vcmp.ge.s32.totalorder %v258, 0
        %vm261 = vcmp.lt.s32.totalorder %v257, 16
        %vm262 = vcmp.lt.s32.totalorder %v258, 16
        %vm263 = vmand %vm259, %vm261
        %vm264 = vmand %vm260, %vm262
        %v265 = vadd.s32 %v255, 4294967294
        %v266 = vadd.s32 %v256, 4294967294
        %vm267 = vcmp.ge.s32.totalorder %v265, 0
        %vm268 = vcmp.ge.s32.totalorder %v266, 0
        %vm269 = vcmp.lt.s32.totalorder %v265, 16
        %vm270 = vcmp.lt.s32.totalorder %v266, 16
        %vm271 = vmand %vm267, %vm269
        %vm272 = vmand %vm268, %vm270
        %v273 = vadd.s32 %v255, 4294967295
        %v274 = vadd.s32 %v256, 4294967295
        %vm275 = vcmp.ge.s32.totalorder %v273, 0
        %vm276 = vcmp.ge.s32.totalorder %v274, 0
        %vm277 = vcmp.lt.s32.totalorder %v273, 16
        %vm278 = vcmp.lt.s32.totalorder %v274, 16
        %vm279 = vmand %vm275, %vm277
        %vm280 = vmand %vm276, %vm278
        %v281 = vadd.s32 %v255, 1
        %v282 = vadd.s32 %v256, 1
        %vm283 = vcmp.ge.s32.totalorder %v281, 0
        %vm284 = vcmp.ge.s32.totalorder %v282, 0
        %vm285 = vcmp.lt.s32.totalorder %v281, 16
        %vm286 = vcmp.lt.s32.totalorder %v282, 16
        %vm287 = vmand %vm283, %vm285
        %vm288 = vmand %vm284, %vm286
        %v289 = vadd.s32 %v255, 2
        %v290 = vadd.s32 %v256, 2
        %vm291 = vcmp.ge.s32.totalorder %v289, 0
        %vm292 = vcmp.ge.s32.totalorder %v290, 0
        %vm293 = vcmp.lt.s32.totalorder %v289, 16
        %vm294 = vcmp.lt.s32.totalorder %v290, 16
        %vm295 = vmand %vm291, %vm293
        %vm296 = vmand %vm292, %vm294
        %v297 = vld [vmem:[%s188] sm:$0xff]
        %v298 = vld [vmem:[%s188 + $0x8] sm:$0xff]
        %v299 = vld [vmem:[#allocation4] sm:$0xff]
        %v300 = vld [vmem:[#allocation4 + $0x8] sm:$0xff]
        %v301 = vld [vmem:[#allocation4 + $0x10] sm:$0xff]
        %v302 = vld [vmem:[#allocation4 + $0x18] sm:$0xff]
        %v303 = vpack.c.bf16 %v301, %v299
        %v304 = vpack.c.bf16 %v302, %v300
        %v305 = vld [vmem:[#allocation6] sm:$0x1]
        %v306 = vperm.slane %v305, 0
        %v309 = vunpack.c.l.b16 %v297
        %v310 = vunpack.c.h.b16 %v297
        %v311 = vunpack.c.l.b16 %v298
        %v312 = vunpack.c.h.b16 %v298
        %v313 = vpack.c.b16 %v311, %v309
        %v314 = vpack.c.b16 %v312, %v310
        %317 = vmatpush.bf16.xpose.msra.mxu0 0
        %318 = vmatpush.bf16.xpose.msra.mxu0 0
        %319 = vmatpush.bf16.xpose.msra.mxu0 0
        %320 = vmatpush.bf16.xpose.msra.mxu0 0
        %321 = vmatpush.bf16.xpose.msra.mxu0 0
        %322 = vmatpush.bf16.xpose.msra.mxu0 0
        %323 = vmatpush.bf16.xpose.msra.mxu0 0
        %324 = vmatpush.bf16.xpose.msra.mxu0 %v303
        %325 = vmatmul.bf16.gmra.mxu0 %v313
        %v326 = vpop.f32.mrf.mxu0
        %v327 = vadd.f32 %v306, %v326
        %v328 = vpop.f32.mrf.mxu0
        %v329 = vadd.f32 %v306, %v328
        %330 = vdwg.mxu0
        %331 = vmatpush.bf16.xpose.msra.mxu0 0
        %332 = vmatpush.bf16.xpose.msra.mxu0 0
        %333 = vmatpush.bf16.xpose.msra.mxu0 0
        %334 = vmatpush.bf16.xpose.msra.mxu0 0
        %335 = vmatpush.bf16.xpose.msra.mxu0 0
        %336 = vmatpush.bf16.xpose.msra.mxu0 0
        %337 = vmatpush.bf16.xpose.msra.mxu0 0
        %338 = vmatpush.bf16.xpose.msra.mxu0 %v304
        %339 = vmatmul.bf16.gmra.mxu0 %v314
        %v340 = vpop.f32.mrf.mxu0
        %v341 = vadd.f32 %v327, %v340
        %v342 = vpop.f32.mrf.mxu0
        %v343 = vadd.f32 %v329, %v342
        %344 = vdwg.mxu0
        %v345 = vrot.slane %v341, 6
        %v346 = vrot.slane %v343, 6
        %vm347 = vcmp.lt.s32.totalorder %v231, 2
        %v348 = vsel %vm347, %v345, %v346
        %v349 = vsel %vm347, %v346, %v345
        %v350 = vsel %vm271, 1, 0
        %v351 = vsel %vm272, 1, 0
        %vm352 = vcmp.eq.s32.totalorder %v350, 1
        %vm353 = vcmp.eq.s32.totalorder %v351, 1
        %v354 = vsel %vm352, %v349, 0.0
        %v355 = vsel %vm353, %v348, 0.0
        %v356 = vrot.slane %v341, 7
        %v357 = vrot.slane %v343, 7
        %vm358 = vcmp.lt.s32.totalorder %v231, 1
        %v359 = vsel %vm358, %v356, %v357
        %v360 = vsel %vm358, %v357, %v356
        %v361 = vsel %vm279, 1, 0
        %v362 = vsel %vm280, 1, 0
        %vm363 = vcmp.eq.s32.totalorder %v361, 1
        %vm364 = vcmp.eq.s32.totalorder %v362, 1
        %v365 = vsel %vm363, %v360, 0.0
        %v366 = vsel %vm364, %v359, 0.0
        %v367 = vrot.slane %v341, 1
        %v368 = vrot.slane %v343, 1
        %vm369 = vcmp.lt.s32.totalorder %v231, 7
        %v370 = vsel %vm369, %v367, %v368
        %v371 = vsel %vm369, %v368, %v367
        %v372 = vsel %vm287, 1, 0
        %v373 = vsel %vm288, 1, 0
        %vm374 = vcmp.eq.s32.totalorder %v372, 1
        %vm375 = vcmp.eq.s32.totalorder %v373, 1
        %v376 = vsel %vm374, %v370, 0.0
        %v377 = vsel %vm375, %v371, 0.0
        %v378 = vrot.slane %v341, 2
        %v379 = vrot.slane %v343, 2
        %vm380 = vcmp.lt.s32.totalorder %v231, 6
        %v381 = vsel %vm380, %v378, %v379
        %v382 = vsel %vm380, %v379, %v378
        %v383 = vsel %vm295, 1, 0
        %v384 = vsel %vm296, 1, 0
        %vm385 = vcmp.eq.s32.totalorder %v383, 1
        %vm386 = vcmp.eq.s32.totalorder %v384, 1
        %v387 = vsel %vm385, %v381, 0.0
        %v388 = vsel %vm386, %v382, 0.0
        %391 = vrot.lane.b32.xlu0 %v365, 16
        %v392 = vpop.permute.xlu0 %391
        %393 = vrot.lane.b32.xlu0 %v366, 16
        %v394 = vpop.permute.xlu0 %393
        %399 = vrot.lane.b32.xlu0 %v341, 32
        %v400 = vpop.permute.xlu0 %399
        %401 = vrot.lane.b32.xlu0 %v343, 32
        %v402 = vpop.permute.xlu0 %401
        %407 = vrot.lane.b32.xlu0 %v376, 48
        %v408 = vpop.permute.xlu0 %407
        %409 = vrot.lane.b32.xlu0 %v377, 48
        %v410 = vpop.permute.xlu0 %409
        %415 = vrot.lane.b32.xlu0 %v387, 64
        %v416 = vpop.permute.xlu0 %415
        %417 = vrot.lane.b32.xlu0 %v388, 64
        %v418 = vpop.permute.xlu0 %417
        %vm421 = vcmask 130048
        %v422 = vsel %vm421, %v354, %v392
        %v423 = vsel %vm421, %v355, %v394
        %vm424 = vcmask 261120
        %v425 = vsel %vm424, %v422, %v400
        %v426 = vsel %vm424, %v423, %v402
        %vm427 = vcmask 392192
        %v428 = vsel %vm427, %v425, %v408
        %v429 = vsel %vm427, %v426, %v410
        %vm430 = vcmask 523264
        %v431 = vsel %vm430, %v428, %v416
        %v432 = vsel %vm430, %v429, %v418
        %v433 = vld [vmem:[#allocation4 + $0x20] sm:$0xff]
        %v434 = vld [vmem:[#allocation4 + $0x30] sm:$0xff]
        %v435 = vld [vmem:[#allocation4 + $0x40] sm:$0xff]
        %v436 = vld [vmem:[#allocation4 + $0x50] sm:$0xff]
        %v437 = vld [vmem:[#allocation4 + $0x60] sm:$0xff]
        %v438 = vld [vmem:[#allocation4 + $0x70] sm:$0xff]
        %v439 = vld [vmem:[#allocation4 + $0x80] sm:$0xff]
        %v440 = vld [vmem:[#allocation4 + $0x90] sm:$0xff]
        %v441 = vld [vmem:[#allocation4 + $0xa0] sm:$0xff]
        %v442 = vld [vmem:[#allocation4 + $0xb0] sm:$0xff]
        %v443 = vld [vmem:[#allocation6 + $0x1] sm:$0x1]
        %v444 = vperm.slane %v443, 0
        %vm445 = vcmask 654336
        %v447 = vsel %vm445, %v431, 0
        %v450 = vsel %vm445, %v432, 0
        %452 = vmatpush.msra.mxu0 0.0
        %453 = vmatpush.msra.mxu0 0.0
        %454 = vmatpush.msra.mxu0 0.0
        %455 = vmatpush.msra.mxu0 0.0
        %456 = vmatpush.msra.mxu0 0.0
        %457 = vmatpush.msra.mxu0 0.0
        %458 = vmatpush.msra.mxu0 %v442
        %459 = vmatpush.msra.mxu0 %v441
        %460 = vmatpush.msra.mxu0 %v440
        %461 = vmatpush.msra.mxu0 %v439
        %462 = vmatpush.msra.mxu0 %v438
        %463 = vmatpush.msra.mxu0 %v437
        %464 = vmatpush.msra.mxu0 %v436
        %465 = vmatpush.msra.mxu0 %v435
        %466 = vmatpush.msra.mxu0 %v434
        %467 = vmatpush.msra.mxu0 %v433
        %468 = vmatmul.f32.gmra.mxu0 %v447
        %v469 = vpop.f32.mrf.mxu0
        %v470 = vadd.f32 %v444, %v469
        %471 = vmatmul.f32.gmra.mxu0 %v450
        %v472 = vpop.f32.mrf.mxu0
        %v473 = vadd.f32 %v444, %v472
        %474 = vdwg.mxu0
        %v475 = vld [vmem:[#allocation4 + $0xc0] sm:$0xff]
        %v476 = vld [vmem:[#allocation4 + $0xd0] sm:$0xff]
        %v477 = vld [vmem:[#allocation4 + $0xe0] sm:$0xff]
        %v478 = vld [vmem:[#allocation4 + $0xf0] sm:$0xff]
        %v479 = vld [vmem:[#allocation6 + $0x2] sm:$0x1]
        %v480 = vperm.slane %v479, 0
        %v482 = vsel %vm424, %v470, 0
        %v485 = vsel %vm424, %v473, 0
        %487 = vmatpush.msra.mxu0 0.0
        %488 = vmatpush.msra.mxu0 0.0
        %489 = vmatpush.msra.mxu0 0.0
        %490 = vmatpush.msra.mxu0 0.0
        %491 = vmatpush.msra.mxu0 0.0
        %492 = vmatpush.msra.mxu0 0.0
        %493 = vmatpush.msra.mxu0 0.0
        %494 = vmatpush.msra.mxu0 0.0
        %495 = vmatpush.msra.mxu0 0.0
        %496 = vmatpush.msra.mxu0 0.0
        %497 = vmatpush.msra.mxu0 0.0
        %498 = vmatpush.msra.mxu0 0.0
        %499 = vmatpush.msra.mxu0 %v478
        %500 = vmatpush.msra.mxu0 %v477
        %501 = vmatpush.msra.mxu0 %v476
        %502 = vmatpush.msra.mxu0 %v475
        %503 = vmatmul.f32.gmra.mxu0 %v482
        %v504 = vpop.f32.mrf.mxu0
        %v505 = vadd.f32 %v480, %v504
        %506 = vmatmul.f32.gmra.mxu0 %v485
        %v507 = vpop.f32.mrf.mxu0
        %v508 = vadd.f32 %v480, %v507
        %509 = vdwg.mxu0
        %v510 = vmax.f32 %v505, 0.0
        %v511 = vmax.f32 %v508, 0.0
        %v512 = vld [vmem:[#allocation6 + $0x3] sm:$0x1]
        %v513 = vperm.slane %v512, 0
        %v514 = vmul.f32 %v510, %v513
        %v515 = vmul.f32 %v511, %v513
        %v516 = vld [vmem:[#allocation6 + $0x4] sm:$0x1]
        %v517 = vperm.slane %v516, 0
        %v518 = vadd.f32 %v514, %v517
        %v519 = vadd.f32 %v515, %v517
        %v520 = vrot.slane %v518, 4
        %v521 = vrot.slane %v519, 4
        %vm522 = vcmp.lt.s32.totalorder %v231, 4
        %v523 = vsel %vm522, %v520, %v521
        %v524 = vsel %vm522, %v521, %v520
        %v525 = vsel %vm263, 1, 0
        %v526 = vsel %vm264, 1, 0
        %vm527 = vcmp.eq.s32.totalorder %v525, 1
        %vm528 = vcmp.eq.s32.totalorder %v526, 1
        %v529 = vsel %vm527, %v524, 0.0
        %v530 = vsel %vm528, %v523, 0.0
        %v531 = vrot.slane %v518, 6
        %v532 = vrot.slane %v519, 6
        %v533 = vsel %vm347, %v531, %v532
        %v534 = vsel %vm347, %v532, %v531
        %v535 = vsel %vm352, %v534, 0.0
        %v536 = vsel %vm353, %v533, 0.0
        %539 = vrot.lane.b32.xlu0 %v535, 32
        %v540 = vpop.permute.xlu0 %539
        %541 = vrot.lane.b32.xlu0 %v536, 32
        %v542 = vpop.permute.xlu0 %541
        %547 = vrot.lane.b32.xlu0 %v518, 64
        %v548 = vpop.permute.xlu0 %547
        %549 = vrot.lane.b32.xlu0 %v519, 64
        %v550 = vpop.permute.xlu0 %549
        %v553 = vsel %vm424, %v529, %v540
        %v554 = vsel %vm424, %v530, %v542
        %v555 = vsel %vm430, %v553, %v548
        %v556 = vsel %vm430, %v554, %v550
        %v557 = vld [vmem:[#allocation4 + $0x100] sm:$0xff]
        %v558 = vld [vmem:[#allocation4 + $0x110] sm:$0xff]
        %v559 = vld [vmem:[#allocation4 + $0x120] sm:$0xff]
        %v560 = vld [vmem:[#allocation4 + $0x130] sm:$0xff]
        %v561 = vld [vmem:[#allocation4 + $0x140] sm:$0xff]
        %v562 = vld [vmem:[#allocation4 + $0x150] sm:$0xff]
        %v563 = vld [vmem:[#allocation4 + $0x160] sm:$0xff]
        %v564 = vld [vmem:[#allocation4 + $0x170] sm:$0xff]
        %v565 = vld [vmem:[#allocation4 + $0x180] sm:$0xff]
        %v566 = vld [vmem:[#allocation4 + $0x190] sm:$0xff]
        %v567 = vld [vmem:[#allocation4 + $0x1a0] sm:$0xff]
        %v568 = vld [vmem:[#allocation4 + $0x1b0] sm:$0xff]
        %v569 = vld [vmem:[#allocation6 + $0x5] sm:$0x1]
        %v570 = vperm.slane %v569, 0
        %vm571 = vcmask 785408
        %v573 = vsel %vm571, %v555, 0
        %v576 = vsel %vm571, %v556, 0
        %578 = vmatpush.msra.mxu0 0.0
        %579 = vmatpush.msra.mxu0 0.0
        %580 = vmatpush.msra.mxu0 0.0
        %581 = vmatpush.msra.mxu0 0.0
        %582 = vmatpush.msra.mxu0 %v568
        %583 = vmatpush.msra.mxu0 %v567
        %584 = vmatpush.msra.mxu0 %v566
        %585 = vmatpush.msra.mxu0 %v565
        %586 = vmatpush.msra.mxu0 %v564
        %587 = vmatpush.msra.mxu0 %v563
        %588 = vmatpush.msra.mxu0 %v562
        %589 = vmatpush.msra.mxu0 %v561
        %590 = vmatpush.msra.mxu0 %v560
        %591 = vmatpush.msra.mxu0 %v559
        %592 = vmatpush.msra.mxu0 %v558
        %593 = vmatpush.msra.mxu0 %v557
        %594 = vmatmul.f32.gmra.mxu0 %v573
        %v595 = vpop.f32.mrf.mxu0
        %v596 = vadd.f32 %v570, %v595
        %597 = vmatmul.f32.gmra.mxu0 %v576
        %v598 = vpop.f32.mrf.mxu0
        %v599 = vadd.f32 %v570, %v598
        %600 = vdwg.mxu0
        %603 = vrot.lane.b32.xlu0 %v596, 112
        %v604 = vpop.permute.xlu0 %603
        %605 = vrot.lane.b32.xlu0 %v599, 112
        %v606 = vpop.permute.xlu0 %605
        %v609 = vadd.f32 %v596, %v604
        %v610 = vadd.f32 %v599, %v606
        %v611 = vld [vmem:[#allocation4 + $0x1c0] sm:$0xff]
        %v612 = vld [vmem:[#allocation4 + $0x1d0] sm:$0xff]
        %v613 = vld [vmem:[#allocation6 + $0x6] sm:$0x1]
        %v614 = vperm.slane %v613, 0
        %v616 = vsel %vm421, %v609, 0
        %v619 = vsel %vm421, %v610, 0
        %621 = vmatpush.msra.mxu0 0.0
        %622 = vmatpush.msra.mxu0 0.0
        %623 = vmatpush.msra.mxu0 0.0
        %624 = vmatpush.msra.mxu0 0.0
        %625 = vmatpush.msra.mxu0 0.0
        %626 = vmatpush.msra.mxu0 0.0
        %627 = vmatpush.msra.mxu0 0.0
        %628 = vmatpush.msra.mxu0 0.0
        %629 = vmatpush.msra.mxu0 0.0
        %630 = vmatpush.msra.mxu0 0.0
        %631 = vmatpush.msra.mxu0 0.0
        %632 = vmatpush.msra.mxu0 0.0
        %633 = vmatpush.msra.mxu0 0.0
        %634 = vmatpush.msra.mxu0 0.0
        %635 = vmatpush.msra.mxu0 %v612
        %636 = vmatpush.msra.mxu0 %v611
        %637 = vmatmul.f32.gmra.mxu0 %v616
        %v638 = vpop.f32.mrf.mxu0
        %v639 = vadd.f32 %v614, %v638
        %640 = vmatmul.f32.gmra.mxu0 %v619
        %v641 = vpop.f32.mrf.mxu0
        %v642 = vadd.f32 %v614, %v641
        %643 = vdwg.mxu0
        %646 = vrot.lane.b32.xlu0 %v639, 124
        %v647 = vpop.permute.xlu0 %646
        %648 = vrot.lane.b32.xlu0 %v642, 124
        %v649 = vpop.permute.xlu0 %648
        %652 = vrot.lane.b32.xlu0 %v639, 120
        %v653 = vpop.permute.xlu0 %652
        %654 = vrot.lane.b32.xlu0 %v642, 120
        %v655 = vpop.permute.xlu0 %654
        %658 = vrot.lane.b32.xlu0 %v639, 116
        %v659 = vpop.permute.xlu0 %658
        %660 = vrot.lane.b32.xlu0 %v642, 116
        %v661 = vpop.permute.xlu0 %660
        %v664 = vmul.f32 %v639, 0.5
        %v665 = vmul.f32 %v642, 0.5
        %v666 = vmul.f32 %v647, 0.5
        %v667 = vmul.f32 %v649, 0.5
        %v668 = vmul.f32 %v653, 0.5
        %v669 = vmul.f32 %v655, 0.5
        %v670 = vmul.f32 %v659, 0.5
        %v671 = vmul.f32 %v661, 0.5
        %672 = vrot.lane.b32.xlu0 %v639, 112
        %v673 = vpop.permute.xlu0 %672
        %674 = vrot.lane.b32.xlu0 %v642, 112
        %v675 = vpop.permute.xlu0 %674
        %vm676 = vcmask 31744
        %v678 = vsel %vm676, %v664, 0
        %v681 = vsel %vm676, %v665, 0
        %v683 = vsel %vm676, %v673, 0
        %v685 = vsel %vm676, %v675, 0
        %687 = vmatpush.xpose.msra.mxu0 0.0
        %688 = vmatpush.xpose.msra.mxu0 0.0
        %689 = vmatpush.xpose.msra.mxu0 0.0
        %690 = vmatpush.xpose.msra.mxu0 0.0
        %691 = vmatpush.xpose.msra.mxu0 0.0
        %692 = vmatpush.xpose.msra.mxu0 0.0
        %693 = vmatpush.xpose.msra.mxu0 0.0
        %694 = vmatpush.xpose.msra.mxu0 0.0
        %695 = vmatpush.xpose.msra.mxu0 0.0
        %696 = vmatpush.xpose.msra.mxu0 0.0
        %697 = vmatpush.xpose.msra.mxu0 0.0
        %698 = vmatpush.xpose.msra.mxu0 0.0
        %699 = vmatpush.xpose.msra.mxu0 0.0
        %700 = vmatpush.xpose.msra.mxu0 0.0
        %701 = vmatpush.xpose.msra.mxu0 %v685
        %702 = vmatpush.xpose.msra.mxu0 %v683
        %703 = vmatmul.f32.gmra.mxu0 %v678
        %v704 = vpop.f32.mrf.mxu0
        %v705 = vadd.f32 0.0, %v704
        %706 = vmatmul.f32.gmra.mxu0 %v681
        %v707 = vpop.f32.mrf.mxu0
        %v708 = vadd.f32 0.0, %v707
        %709 = vdwg.mxu0
        %710 = vrot.lane.b32.xlu0 %v647, 112
        %v711 = vpop.permute.xlu0 %710
        %712 = vrot.lane.b32.xlu0 %v649, 112
        %v713 = vpop.permute.xlu0 %712
        %v715 = vsel %vm676, %v666, 0
        %v718 = vsel %vm676, %v667, 0
        %v720 = vsel %vm676, %v711, 0
        %v722 = vsel %vm676, %v713, 0
        %724 = vmatpush.xpose.msra.mxu0 0.0
        %725 = vmatpush.xpose.msra.mxu0 0.0
        %726 = vmatpush.xpose.msra.mxu0 0.0
        %727 = vmatpush.xpose.msra.mxu0 0.0
        %728 = vmatpush.xpose.msra.mxu0 0.0
        %729 = vmatpush.xpose.msra.mxu0 0.0
        %730 = vmatpush.xpose.msra.mxu0 0.0
        %731 = vmatpush.xpose.msra.mxu0 0.0
        %732 = vmatpush.xpose.msra.mxu0 0.0
        %733 = vmatpush.xpose.msra.mxu0 0.0
        %734 = vmatpush.xpose.msra.mxu0 0.0
        %735 = vmatpush.xpose.msra.mxu0 0.0
        %736 = vmatpush.xpose.msra.mxu0 0.0
        %737 = vmatpush.xpose.msra.mxu0 0.0
        %738 = vmatpush.xpose.msra.mxu0 %v722
        %739 = vmatpush.xpose.msra.mxu0 %v720
        %740 = vmatmul.f32.gmra.mxu0 %v715
        %v741 = vpop.f32.mrf.mxu0
        %v742 = vadd.f32 0.0, %v741
        %743 = vmatmul.f32.gmra.mxu0 %v718
        %v744 = vpop.f32.mrf.mxu0
        %v745 = vadd.f32 0.0, %v744
        %746 = vdwg.mxu0
        %747 = vrot.lane.b32.xlu0 %v653, 112
        %v748 = vpop.permute.xlu0 %747
        %749 = vrot.lane.b32.xlu0 %v655, 112
        %v750 = vpop.permute.xlu0 %749
        %v752 = vsel %vm676, %v668, 0
        %v755 = vsel %vm676, %v669, 0
        %v757 = vsel %vm676, %v748, 0
        %v759 = vsel %vm676, %v750, 0
        %761 = vmatpush.xpose.msra.mxu0 0.0
        %762 = vmatpush.xpose.msra.mxu0 0.0
        %763 = vmatpush.xpose.msra.mxu0 0.0
        %764 = vmatpush.xpose.msra.mxu0 0.0
        %765 = vmatpush.xpose.msra.mxu0 0.0
        %766 = vmatpush.xpose.msra.mxu0 0.0
        %767 = vmatpush.xpose.msra.mxu0 0.0
        %768 = vmatpush.xpose.msra.mxu0 0.0
        %769 = vmatpush.xpose.msra.mxu0 0.0
        %770 = vmatpush.xpose.msra.mxu0 0.0
        %771 = vmatpush.xpose.msra.mxu0 0.0
        %772 = vmatpush.xpose.msra.mxu0 0.0
        %773 = vmatpush.xpose.msra.mxu0 0.0
        %774 = vmatpush.xpose.msra.mxu0 0.0
        %775 = vmatpush.xpose.msra.mxu0 %v759
        %776 = vmatpush.xpose.msra.mxu0 %v757
        %777 = vmatmul.f32.gmra.mxu0 %v752
        %v778 = vpop.f32.mrf.mxu0
        %v779 = vadd.f32 0.0, %v778
        %780 = vmatmul.f32.gmra.mxu0 %v755
        %v781 = vpop.f32.mrf.mxu0
        %v782 = vadd.f32 0.0, %v781
        %783 = vdwg.mxu0
        %784 = vrot.lane.b32.xlu0 %v659, 112
        %v785 = vpop.permute.xlu0 %784
        %786 = vrot.lane.b32.xlu0 %v661, 112
        %v787 = vpop.permute.xlu0 %786
        %v789 = vsel %vm676, %v670, 0
        %v792 = vsel %vm676, %v671, 0
        %v794 = vsel %vm676, %v785, 0
        %v796 = vsel %vm676, %v787, 0
        %798 = vmatpush.xpose.msra.mxu0 0.0
        %799 = vmatpush.xpose.msra.mxu0 0.0
        %800 = vmatpush.xpose.msra.mxu0 0.0
        %801 = vmatpush.xpose.msra.mxu0 0.0
        %802 = vmatpush.xpose.msra.mxu0 0.0
        %803 = vmatpush.xpose.msra.mxu0 0.0
        %804 = vmatpush.xpose.msra.mxu0 0.0
        %805 = vmatpush.xpose.msra.mxu0 0.0
        %806 = vmatpush.xpose.msra.mxu0 0.0
        %807 = vmatpush.xpose.msra.mxu0 0.0
        %808 = vmatpush.xpose.msra.mxu0 0.0
        %809 = vmatpush.xpose.msra.mxu0 0.0
        %810 = vmatpush.xpose.msra.mxu0 0.0
        %811 = vmatpush.xpose.msra.mxu0 0.0
        %812 = vmatpush.xpose.msra.mxu0 %v796
        %813 = vmatpush.xpose.msra.mxu0 %v794
        %814 = vmatmul.f32.gmra.mxu0 %v789
        %v815 = vpop.f32.mrf.mxu0
        %v816 = vadd.f32 0.0, %v815
        %817 = vmatmul.f32.gmra.mxu0 %v792
        %v818 = vpop.f32.mrf.mxu0
        %v819 = vadd.f32 0.0, %v818
        %820 = vdwg.mxu0
        %v821 = vsel %vm421, %v705, -inf
        %822 = vmax.xlane.f32.xlu0 %v821
        %v823 = vpop.xlane.xlu0 %822
        %v824 = vsel %vm421, %v708, -inf
        %825 = vmax.xlane.f32.xlu0 %v824
        %v826 = vpop.xlane.xlu0 %825
        %v827 = vsel %vm421, %v742, -inf
        %828 = vmax.xlane.f32.xlu0 %v827
        %v829 = vpop.xlane.xlu0 %828
        %v830 = vsel %vm421, %v745, -inf
        %831 = vmax.xlane.f32.xlu0 %v830
        %v832 = vpop.xlane.xlu0 %831
        %v833 = vsel %vm421, %v779, -inf
        %834 = vmax.xlane.f32.xlu0 %v833
        %v835 = vpop.xlane.xlu0 %834
        %v836 = vsel %vm421, %v782, -inf
        %837 = vmax.xlane.f32.xlu0 %v836
        %v838 = vpop.xlane.xlu0 %837
        %v839 = vsel %vm421, %v816, -inf
        %840 = vmax.xlane.f32.xlu0 %v839
        %v841 = vpop.xlane.xlu0 %840
        %v842 = vsel %vm421, %v819, -inf
        %843 = vmax.xlane.f32.xlu0 %v842
        %v844 = vpop.xlane.xlu0 %843
        %v845 = vsub.f32 %v705, %v823
        %v846 = vsub.f32 %v708, %v826
        %v847 = vsub.f32 %v742, %v829
        %v848 = vsub.f32 %v745, %v832
        %v849 = vsub.f32 %v779, %v835
        %v850 = vsub.f32 %v782, %v838
        %v851 = vsub.f32 %v816, %v841
        %v852 = vsub.f32 %v819, %v844
        %v853 = vmul.f32 %v845, 1.442695
        %v854 = vpow.pop %v853
        %v855 = vmul.f32 %v846, 1.442695
        %v856 = vpow.pop %v855
        %v857 = vmul.f32 %v847, 1.442695
        %v858 = vpow.pop %v857
        %v859 = vmul.f32 %v848, 1.442695
        %v860 = vpow.pop %v859
        %v861 = vmul.f32 %v849, 1.442695
        %v862 = vpow.pop %v861
        %v863 = vmul.f32 %v850, 1.442695
        %v864 = vpow.pop %v863
        %v865 = vmul.f32 %v851, 1.442695
        %v866 = vpow.pop %v865
        %v867 = vmul.f32 %v852, 1.442695
        %v868 = vpow.pop %v867
        %v869 = vsel %vm421, %v854, 0.0
        %870 = vadd.xlane.f32.xlu0 %v869
        %v871 = vpop.xlane.xlu0 %870
        %v872 = vsel %vm421, %v856, 0.0
        %873 = vadd.xlane.f32.xlu0 %v872
        %v874 = vpop.xlane.xlu0 %873
        %v875 = vsel %vm421, %v858, 0.0
        %876 = vadd.xlane.f32.xlu0 %v875
        %v877 = vpop.xlane.xlu0 %876
        %v878 = vsel %vm421, %v860, 0.0
        %879 = vadd.xlane.f32.xlu0 %v878
        %v880 = vpop.xlane.xlu0 %879
        %v881 = vsel %vm421, %v862, 0.0
        %882 = vadd.xlane.f32.xlu0 %v881
        %v883 = vpop.xlane.xlu0 %882
        %v884 = vsel %vm421, %v864, 0.0
        %885 = vadd.xlane.f32.xlu0 %v884
        %v886 = vpop.xlane.xlu0 %885
        %v887 = vsel %vm421, %v866, 0.0
        %888 = vadd.xlane.f32.xlu0 %v887
        %v889 = vpop.xlane.xlu0 %888
        %v890 = vsel %vm421, %v868, 0.0
        %891 = vadd.xlane.f32.xlu0 %v890
        %v892 = vpop.xlane.xlu0 %891
        %v893 = vrcp.pop %v871
        %v894 = vrcp.pop %v874
        %v895 = vrcp.pop %v877
        %v896 = vrcp.pop %v880
        %v897 = vrcp.pop %v883
        %v898 = vrcp.pop %v886
        %v899 = vrcp.pop %v889
        %v900 = vrcp.pop %v892
        %v901 = vmul.f32 %v854, %v893
        %v902 = vmul.f32 %v856, %v894
        %v903 = vmul.f32 %v858, %v895
        %v904 = vmul.f32 %v860, %v896
        %v905 = vmul.f32 %v862, %v897
        %v906 = vmul.f32 %v864, %v898
        %v907 = vmul.f32 %v866, %v899
        %v908 = vmul.f32 %v868, %v900
        %909 = vrot.lane.b32.xlu0 %v639, 96
        %v910 = vpop.permute.xlu0 %909
        %911 = vrot.lane.b32.xlu0 %v642, 96
        %v912 = vpop.permute.xlu0 %911
        %v916 = vsel %vm421, %v901, 0
        %v919 = vsel %vm421, %v902, 0
        %921 = vmatpush.msra.mxu0 0.0
        %922 = vmatpush.msra.mxu0 0.0
        %923 = vmatpush.msra.mxu0 0.0
        %924 = vmatpush.msra.mxu0 0.0
        %925 = vmatpush.msra.mxu0 0.0
        %926 = vmatpush.msra.mxu0 0.0
        %927 = vmatpush.msra.mxu0 0.0
        %928 = vmatpush.msra.mxu0 0.0
        %929 = vmatpush.msra.mxu0 0.0
        %930 = vmatpush.msra.mxu0 0.0
        %931 = vmatpush.msra.mxu0 0.0
        %932 = vmatpush.msra.mxu0 0.0
        %933 = vmatpush.msra.mxu0 0.0
        %934 = vmatpush.msra.mxu0 0.0
        %935 = vmatpush.msra.mxu0 %v912
        %936 = vmatpush.msra.mxu0 %v910
        %937 = vmatmul.f32.gmra.mxu0 %v916
        %v938 = vpop.f32.mrf.mxu0
        %v939 = vadd.f32 0.0, %v938
        %940 = vmatmul.f32.gmra.mxu0 %v919
        %v941 = vpop.f32.mrf.mxu0
        %v942 = vadd.f32 0.0, %v941
        %943 = vdwg.mxu0
        %944 = vrot.lane.b32.xlu0 %v647, 96
        %v945 = vpop.permute.xlu0 %944
        %946 = vrot.lane.b32.xlu0 %v649, 96
        %v947 = vpop.permute.xlu0 %946
        %v951 = vsel %vm421, %v903, 0
        %v954 = vsel %vm421, %v904, 0
        %956 = vmatpush.msra.mxu0 0.0
        %957 = vmatpush.msra.mxu0 0.0
        %958 = vmatpush.msra.mxu0 0.0
        %959 = vmatpush.msra.mxu0 0.0
        %960 = vmatpush.msra.mxu0 0.0
        %961 = vmatpush.msra.mxu0 0.0
        %962 = vmatpush.msra.mxu0 0.0
        %963 = vmatpush.msra.mxu0 0.0
        %964 = vmatpush.msra.mxu0 0.0
        %965 = vmatpush.msra.mxu0 0.0
        %966 = vmatpush.msra.mxu0 0.0
        %967 = vmatpush.msra.mxu0 0.0
        %968 = vmatpush.msra.mxu0 0.0
        %969 = vmatpush.msra.mxu0 0.0
        %970 = vmatpush.msra.mxu0 %v947
        %971 = vmatpush.msra.mxu0 %v945
        %972 = vmatmul.f32.gmra.mxu0 %v951
        %v973 = vpop.f32.mrf.mxu0
        %v974 = vadd.f32 0.0, %v973
        %975 = vmatmul.f32.gmra.mxu0 %v954
        %v976 = vpop.f32.mrf.mxu0
        %v977 = vadd.f32 0.0, %v976
        %978 = vdwg.mxu0
        %979 = vrot.lane.b32.xlu0 %v653, 96
        %v980 = vpop.permute.xlu0 %979
        %981 = vrot.lane.b32.xlu0 %v655, 96
        %v982 = vpop.permute.xlu0 %981
        %v986 = vsel %vm421, %v905, 0
        %v989 = vsel %vm421, %v906, 0
        %991 = vmatpush.msra.mxu0 0.0
        %992 = vmatpush.msra.mxu0 0.0
        %993 = vmatpush.msra.mxu0 0.0
        %994 = vmatpush.msra.mxu0 0.0
        %995 = vmatpush.msra.mxu0 0.0
        %996 = vmatpush.msra.mxu0 0.0
        %997 = vmatpush.msra.mxu0 0.0
        %998 = vmatpush.msra.mxu0 0.0
        %999 = vmatpush.msra.mxu0 0.0
        %1000 = vmatpush.msra.mxu0 0.0
        %1001 = vmatpush.msra.mxu0 0.0
        %1002 = vmatpush.msra.mxu0 0.0
        %1003 = vmatpush.msra.mxu0 0.0
        %1004 = vmatpush.msra.mxu0 0.0
        %1005 = vmatpush.msra.mxu0 %v982
        %1006 = vmatpush.msra.mxu0 %v980
        %1007 = vmatmul.f32.gmra.mxu0 %v986
        %v1008 = vpop.f32.mrf.mxu0
        %v1009 = vadd.f32 0.0, %v1008
        %1010 = vmatmul.f32.gmra.mxu0 %v989
        %v1011 = vpop.f32.mrf.mxu0
        %v1012 = vadd.f32 0.0, %v1011
        %1013 = vdwg.mxu0
        %1014 = vrot.lane.b32.xlu0 %v659, 96
        %v1015 = vpop.permute.xlu0 %1014
        %1016 = vrot.lane.b32.xlu0 %v661, 96
        %v1017 = vpop.permute.xlu0 %1016
        %v1021 = vsel %vm421, %v907, 0
        %v1024 = vsel %vm421, %v908, 0
        %1026 = vmatpush.msra.mxu0 0.0
        %1027 = vmatpush.msra.mxu0 0.0
        %1028 = vmatpush.msra.mxu0 0.0
        %1029 = vmatpush.msra.mxu0 0.0
        %1030 = vmatpush.msra.mxu0 0.0
        %1031 = vmatpush.msra.mxu0 0.0
        %1032 = vmatpush.msra.mxu0 0.0
        %1033 = vmatpush.msra.mxu0 0.0
        %1034 = vmatpush.msra.mxu0 0.0
        %1035 = vmatpush.msra.mxu0 0.0
        %1036 = vmatpush.msra.mxu0 0.0
        %1037 = vmatpush.msra.mxu0 0.0
        %1038 = vmatpush.msra.mxu0 0.0
        %1039 = vmatpush.msra.mxu0 0.0
        %1040 = vmatpush.msra.mxu0 %v1017
        %1041 = vmatpush.msra.mxu0 %v1015
        %1042 = vmatmul.f32.gmra.mxu0 %v1021
        %v1043 = vpop.f32.mrf.mxu0
        %v1044 = vadd.f32 0.0, %v1043
        %1045 = vmatmul.f32.gmra.mxu0 %v1024
        %v1046 = vpop.f32.mrf.mxu0
        %v1047 = vadd.f32 0.0, %v1046
        %1048 = vdwg.mxu0
        %1051 = vrot.lane.b32.xlu0 %v974, 4
        %v1052 = vpop.permute.xlu0 %1051
        %1053 = vrot.lane.b32.xlu0 %v977, 4
        %v1054 = vpop.permute.xlu0 %1053
        %1059 = vrot.lane.b32.xlu0 %v1009, 8
        %v1060 = vpop.permute.xlu0 %1059
        %1061 = vrot.lane.b32.xlu0 %v1012, 8
        %v1062 = vpop.permute.xlu0 %1061
        %1067 = vrot.lane.b32.xlu0 %v1044, 12
        %v1068 = vpop.permute.xlu0 %1067
        %1069 = vrot.lane.b32.xlu0 %v1047, 12
        %v1070 = vpop.permute.xlu0 %1069
        %v1073 = vsel %vm676, %v939, %v1052
        %v1074 = vsel %vm676, %v942, %v1054
        %vm1075 = vcmask 64512
        %v1076 = vsel %vm1075, %v1073, %v1060
        %v1077 = vsel %vm1075, %v1074, %v1062
        %vm1078 = vcmask 97280
        %v1079 = vsel %vm1078, %v1076, %v1068
        %v1080 = vsel %vm1078, %v1077, %v1070
        %v1081 = vld [vmem:[#allocation4 + $0x1e0] sm:$0xff]
        %v1082 = vld [vmem:[#allocation4 + $0x1f0] sm:$0xff]
        %v1083 = vld [vmem:[#allocation6 + $0x7] sm:$0x1]
        %v1084 = vperm.slane %v1083, 0
        %v1086 = vsel %vm421, %v1079, 0
        %v1089 = vsel %vm421, %v1080, 0
        %1091 = vmatpush.msra.mxu0 0.0
        %1092 = vmatpush.msra.mxu0 0.0
        %1093 = vmatpush.msra.mxu0 0.0
        %1094 = vmatpush.msra.mxu0 0.0
        %1095 = vmatpush.msra.mxu0 0.0
        %1096 = vmatpush.msra.mxu0 0.0
        %1097 = vmatpush.msra.mxu0 0.0
        %1098 = vmatpush.msra.mxu0 0.0
        %1099 = vmatpush.msra.mxu0 0.0
        %1100 = vmatpush.msra.mxu0 0.0
        %1101 = vmatpush.msra.mxu0 0.0
        %1102 = vmatpush.msra.mxu0 0.0
        %1103 = vmatpush.msra.mxu0 0.0
        %1104 = vmatpush.msra.mxu0 0.0
        %1105 = vmatpush.msra.mxu0 %v1082
        %1106 = vmatpush.msra.mxu0 %v1081
        %1107 = vmatmul.f32.gmra.mxu0 %v1086
        %v1108 = vpop.f32.mrf.mxu0
        %v1109 = vadd.f32 %v1084, %v1108
        %1110 = vmatmul.f32.gmra.mxu0 %v1089
        %v1111 = vpop.f32.mrf.mxu0
        %v1112 = vadd.f32 %v1084, %v1111
        %1113 = vdwg.mxu0
        %v1114 = vld [vmem:[#allocation4 + $0x200] sm:$0xff]
        %v1115 = vld [vmem:[#allocation4 + $0x210] sm:$0xff]
        %v1116 = vld [vmem:[#allocation6 + $0x8] sm:$0x1]
        %v1117 = vperm.slane %v1116, 0
        %v1119 = vsel %vm421, %v1109, 0
        %v1122 = vsel %vm421, %v1112, 0
        %1124 = vmatpush.msra.mxu0 0.0
        %1125 = vmatpush.msra.mxu0 0.0
        %1126 = vmatpush.msra.mxu0 0.0
        %1127 = vmatpush.msra.mxu0 0.0
        %1128 = vmatpush.msra.mxu0 0.0
        %1129 = vmatpush.msra.mxu0 0.0
        %1130 = vmatpush.msra.mxu0 0.0
        %1131 = vmatpush.msra.mxu0 0.0
        %1132 = vmatpush.msra.mxu0 0.0
        %1133 = vmatpush.msra.mxu0 0.0
        %1134 = vmatpush.msra.mxu0 0.0
        %1135 = vmatpush.msra.mxu0 0.0
        %1136 = vmatpush.msra.mxu0 0.0
        %1137 = vmatpush.msra.mxu0 0.0
        %1138 = vmatpush.msra.mxu0 %v1115
        %1139 = vmatpush.msra.mxu0 %v1114
        %1140 = vmatmul.f32.gmra.mxu0 %v1119
        %v1141 = vpop.f32.mrf.mxu0
        %v1142 = vadd.f32 %v1117, %v1141
        %1143 = vmatmul.f32.gmra.mxu0 %v1122
        %v1144 = vpop.f32.mrf.mxu0
        %v1145 = vadd.f32 %v1117, %v1144
        %1146 = vdwg.mxu0
        %1147 = vst.msk [vmem:[%s227] sm:$0xff] %vm1075, %v1142
        %1148 = vst.msk [vmem:[%s227 + $0x8] sm:$0xff] %vm1075, %v1145
        %s1149 = smul.u32 2, %s18
        %p1150 = scmp.lt.s32.totalorder %s1149, 3
        %s1151 = scalar_select %p1150, %s1149, 3
        %s1152 = smul.addr %s1151, 8
        %s1153 = scalar_lea.vmem %s3, %s1152
        // Predicated region
        $region45: #{tpu_custom_call.1} parent=31 // pred_check
          %p1154 = pneg %p104
        $region46: #{tpu_custom_call.1} parent=31 // pred_check_branch
          %1156 = sbr.rel (%p1154) target = $region48
        $region47: #{tpu_custom_call.1} parent=31 // pred_region
          %s1157 = smul.u32 2, %s18
        $region48: #{tpu_custom_call.1} parent=31 // pred_fallthru
          _
      $region32: #{tpu_custom_call.1} parent=5 // pred_fallthru
        _
      %p1158 = scmp.le.s32.totalorder 2, %s13
      // Predicated region
      $region49: #{tpu_custom_call.1} parent=5 // pred_check
        %p1159 = pneg %p1158
      $region50: #{tpu_custom_call.1} parent=5 // pred_check_branch
        %1161 = sbr.rel (%p1159) target = $region52
      $region51: #{tpu_custom_call.1} parent=5 // pred_region
        %s1162 = ssub.s32 %s13, 2
        // Predicated region
        $region53: #{tpu_custom_call.1} parent=51 // pred_check
          %p1163 = pneg %p110
        $region54: #{tpu_custom_call.1} parent=51 // pred_check_branch
          %1165 = sbr.rel (%p1163) target = $region56
        $region55: #{tpu_custom_call.1} parent=51 // pred_region
          %s1166 = smul.u32 2, %s19
          %p1167 = scmp.lt.s32.totalorder %s1166, 3
          %s1168 = scalar_select %p1167, %s1166, 3
          %s1169 = smul.addr %s1168, 8
          %s1170 = scalar_lea.vmem %s3, %s1169
        $region56: #{tpu_custom_call.1} parent=51 // pred_fallthru
          _
      $region52: #{tpu_custom_call.1} parent=5 // pred_fallthru
        _
    $region6: #{tpu_custom_call.1} parent=1 // loop_footer
      %s17 = sadd.s32 1, %s13
    $region7: #{tpu_custom_call.1} parent=1 // loop_footer_branch
      %12 = sbr.rel target = $region3
    $region8: #{tpu_custom_call.1} parent=1 // loop_exit
      _
    %1171 = vsyncpa [#allocation3], 1
    %s1172 = scalar_lea.sflag [#allocation3], 1
    %1173 = vsyncpa %s1172, 1
    %1174 = vsyncpa [#allocation5], 1

</llo_original>
